<compile_context>
chip_gen: v7x
topology: tpu7x:2x2x1
jax: 0.10.0
libtpu: 0.0.40
codegen_flags: <defaults>
</compile_context>

<pallas_src>
import functools

import jax
import jax.numpy as jnp
from jax.experimental import pallas as pl
from jax.experimental.pallas import tpu as pltpu

# ----------------------------- tiny BERT config ------------------------------
VOCAB = 128
HIDDEN = 32
N_LAYERS = 2
N_HEADS = 2
HEAD_DIM = HIDDEN // N_HEADS
INTERMEDIATE = 64
MAX_POS = 16
TYPE_VOCAB = 2
NUM_LABELS = 5
PAD_LABELS = 128          # lane-dense classifier output (sliced to NUM_LABELS outside)
LN_EPS = 1e-12
NEG_BIG = -1e9            # "minus infinity" for padded logits / cross-batch attention

# row indices inside the per-layer packed vector slab (L, 8, 128)
_R_BQKV, _R_BO, _R_LN1G, _R_LN1B, _R_B1, _R_B2, _R_LN2G, _R_LN2B = range(8)
# row indices inside the global packed vector slab (3, 128)
_R_ELNG, _R_ELNB, _R_CLSB = range(3)


def _full_spec(shape):
    # whole-array block, no grid -> index_map takes no args
    return pl.BlockSpec(shape, lambda shape=shape: (0,) * len(shape))


# ------------------------------ fused BERT kernel -----------------------------
def _bert_kernel(idtt_ref, mask_ref,
                 wemb_ref, pte_ref, gvec_ref, lvec_ref,
                 wqkv_ref, wo_ref, w1_ref, w2_ref, clsw_ref,
                 out_ref, ctx_ref,
                 *, batch, seq, n_layers, n_heads, head_dim, hidden, inter, eps):
    bs = batch * seq

    def mm(a, w_bf16):
        # MXU matmul: activation cast to bf16, weights already bf16, f32 accumulate.
        return jnp.dot(a.astype(jnp.bfloat16), w_bf16,
                       preferred_element_type=jnp.float32)

    def layernorm(x, g, b):
        mu = jnp.mean(x, axis=-1, keepdims=True)
        var = jnp.mean(jnp.square(x - mu), axis=-1, keepdims=True)
        return (x - mu) * jax.lax.rsqrt(var + eps) * g + b

    def softmax_lastdim(s, exact):
        m = jnp.max(s, axis=-1, keepdims=True)
        e = jnp.exp(s - m)
        d = jnp.sum(e, axis=-1, keepdims=True)
        if exact:
            return e / d                                   # exact output probabilities
        return e * pl.reciprocal(d, approx=True)           # EUP path inside attention

    # -------- embeddings: one-hot "gather" on the VMEM-resident vocab table ----
    ids = idtt_ref[:, 0:1]                                            # (bs, 1) i32
    tt = idtt_ref[:, 1:2]                                             # (bs, 1) i32
    vocab_iota = jax.lax.broadcasted_iota(jnp.int32, (bs, VOCAB), 1)
    onehot = (vocab_iota == ids).astype(jnp.bfloat16)                 # exact in bf16
    word = jnp.dot(onehot, wemb_ref[...],
                   preferred_element_type=jnp.float32)                # (bs, H)

    pos = pte_ref[0:bs, :]                                            # (bs, H)
    type_vec = jnp.zeros((bs, hidden), jnp.float32)
    for t in range(TYPE_VOCAB):                                       # exact per-type select
        type_vec = type_vec + (tt == t).astype(jnp.float32) * pte_ref[bs + t:bs + t + 1, :]

    x = layernorm(word + pos + type_vec,
                  gvec_ref[_R_ELNG:_R_ELNG + 1, 0:hidden],
                  gvec_ref[_R_ELNB:_R_ELNB + 1, 0:hidden])
    # nn.Dropout(0.1) layers are identity in eval mode.

    # -------- additive attention bias over all (bs x bs) score entries ---------
    # within a batch: (1 - mask) * -10000 on key positions (BERT extended mask);
    # across batches: NEG_BIG (block-diagonal attention).
    key_bias = (1.0 - mask_ref[...]) * (-10000.0)                     # (1, bs)
    row_iota = jax.lax.broadcasted_iota(jnp.int32, (bs, bs), 0)
    col_iota = jax.lax.broadcasted_iota(jnp.int32, (bs, bs), 1)
    if seq & (seq - 1) == 0:                                          # power of two -> shift
        sh = seq.bit_length() - 1
        row_b = row_iota >> sh
        col_b = col_iota >> sh
    else:
        row_b = row_iota // seq
        col_b = col_iota // seq
    bias = jnp.where(row_b == col_b, key_bias, NEG_BIG)               # (bs, bs)

    scale = 1.0 / float(head_dim) ** 0.5

    # ------------------------------- encoder layers ----------------------------
    for l in range(n_layers):
        qkv = mm(x, wqkv_ref[l]) + lvec_ref[l, _R_BQKV:_R_BQKV + 1, 0:3 * hidden]
        for h in range(n_heads):
            q = qkv[:, h * head_dim:(h + 1) * head_dim]
            k = qkv[:, hidden + h * head_dim:hidden + (h + 1) * head_dim]
            v = qkv[:, 2 * hidden + h * head_dim:2 * hidden + (h + 1) * head_dim]
            # q . k^T without an explicit transpose: contract dim 1 of both operands.
            s = jax.lax.dot_general(
                q.astype(jnp.bfloat16), k.astype(jnp.bfloat16),
                dimension_numbers=(((1,), (1,)), ((), ())),
                preferred_element_type=jnp.float32) * scale + bias    # (bs, bs)
            p = softmax_lastdim(s, exact=False)
            # write this head's context at its static lane offset (no concat)
            ctx_ref[:, h * head_dim:(h + 1) * head_dim] = jnp.dot(
                p.astype(jnp.bfloat16), v.astype(jnp.bfloat16),
                preferred_element_type=jnp.float32)
        attn_out = mm(ctx_ref[...], wo_ref[l]) + lvec_ref[l, _R_BO:_R_BO + 1, 0:hidden]
        x = layernorm(attn_out + x,
                      lvec_ref[l, _R_LN1G:_R_LN1G + 1, 0:hidden],
                      lvec_ref[l, _R_LN1B:_R_LN1B + 1, 0:hidden])
        # TODO(synk): HuggingFace BERT uses erf-based gelu; tanh approximation kept here.
        hmid = jax.nn.gelu(mm(x, w1_ref[l]) + lvec_ref[l, _R_B1:_R_B1 + 1, 0:inter],
                           approximate=True)
        ffn_out = mm(hmid, w2_ref[l]) + lvec_ref[l, _R_B2:_R_B2 + 1, 0:hidden]
        x = layernorm(ffn_out + x,
                      lvec_ref[l, _R_LN2G:_R_LN2G + 1, 0:hidden],
                      lvec_ref[l, _R_LN2B:_R_LN2B + 1, 0:hidden])

    # ------------------ classifier + softmax (lane-dense, 128 wide) ------------
    # padded weight columns are 0 and padded bias lanes are NEG_BIG -> padded probs = 0
    logits = mm(x, clsw_ref[...]) + gvec_ref[_R_CLSB:_R_CLSB + 1, :]  # (bs, 128)
    out_ref[...] = softmax_lastdim(logits, exact=True).astype(out_ref.dtype)


# ------------------------------ parameter init --------------------------------
def init_params(key):
    def normal(k, shape, std=0.02):
        return std * jax.random.normal(k, shape, dtype=jnp.float32)

    keys = iter(jax.random.split(key, 64))
    p = {
        "word_emb": normal(next(keys), (VOCAB, HIDDEN)),
        "pos_emb": normal(next(keys), (MAX_POS, HIDDEN)),
        "type_emb": normal(next(keys), (TYPE_VOCAB, HIDDEN)),
        "emb_ln_g": jnp.ones((HIDDEN,), jnp.float32),
        "emb_ln_b": jnp.zeros((HIDDEN,), jnp.float32),
        "layers": [],
        "cls_w": normal(next(keys), (HIDDEN, NUM_LABELS)),
        "cls_b": jnp.zeros((NUM_LABELS,), jnp.float32),
    }
    for _ in range(N_LAYERS):
        layer = {
            "wq": normal(next(keys), (HIDDEN, HIDDEN)), "bq": jnp.zeros((HIDDEN,), jnp.float32),
            "wk": normal(next(keys), (HIDDEN, HIDDEN)), "bk": jnp.zeros((HIDDEN,), jnp.float32),
            "wv": normal(next(keys), (HIDDEN, HIDDEN)), "bv": jnp.zeros((HIDDEN,), jnp.float32),
            "wo": normal(next(keys), (HIDDEN, HIDDEN)), "bo": jnp.zeros((HIDDEN,), jnp.float32),
            "ln1_g": jnp.ones((HIDDEN,), jnp.float32), "ln1_b": jnp.zeros((HIDDEN,), jnp.float32),
            "w1": normal(next(keys), (HIDDEN, INTERMEDIATE)),
            "b1": jnp.zeros((INTERMEDIATE,), jnp.float32),
            "w2": normal(next(keys), (INTERMEDIATE, HIDDEN)),
            "b2": jnp.zeros((HIDDEN,), jnp.float32),
            "ln2_g": jnp.ones((HIDDEN,), jnp.float32), "ln2_b": jnp.zeros((HIDDEN,), jnp.float32),
        }
        p["layers"].append(layer)
    return p


def pack_params(p, batch, seq):
    """One-time re-layout for the fused kernel:
       * QKV concat + per-layer stacking, matmul weights pre-cast to bf16
       * all tiny bias / LN vectors packed into two lane-padded slabs
       * position + type embedding tables stacked into one array
       * classifier lane-padded to 128 (zero weight cols, NEG_BIG bias lanes)."""
    layers = p["layers"]
    f32, bf16 = jnp.float32, jnp.bfloat16

    def padrow(v, fill=0.0, width=128):
        r = jnp.full((width,), fill, f32)
        return r.at[:v.shape[0]].set(v.astype(f32))

    layer_vecs = jnp.stack([
        jnp.stack([
            padrow(jnp.concatenate([l["bq"], l["bk"], l["bv"]])),   # _R_BQKV
            padrow(l["bo"]),                                        # _R_BO
            padrow(l["ln1_g"]),                                     # _R_LN1G
            padrow(l["ln1_b"]),                                     # _R_LN1B
            padrow(l["b1"]),                                        # _R_B1
            padrow(l["b2"]),                                        # _R_B2
            padrow(l["ln2_g"]),                                     # _R_LN2G
            padrow(l["ln2_b"]),                                     # _R_LN2B
        ]) for l in layers
    ])                                                              # (L, 8, 128) f32

    glob_vecs = jnp.stack([
        padrow(p["emb_ln_g"]),                                      # _R_ELNG
        padrow(p["emb_ln_b"]),                                      # _R_ELNB
        padrow(p["cls_b"], fill=NEG_BIG),                           # _R_CLSB
    ])                                                              # (3, 128) f32

    pos_type = jnp.concatenate(
        [jnp.tile(p["pos_emb"][:seq], (batch, 1)), p["type_emb"]], axis=0)  # (bs+T, H) f32

    cls_w_pad = jnp.zeros((HIDDEN, PAD_LABELS), f32).at[:, :NUM_LABELS].set(p["cls_w"])

    return {
        "word_emb": p["word_emb"].astype(bf16),                     # (VOCAB, H) bf16
        "pos_type": pos_type,                                       # (bs+T, H) f32
        "glob_vecs": glob_vecs,
        "layer_vecs": layer_vecs,
        "wqkv": jnp.stack([jnp.concatenate([l["wq"], l["wk"], l["wv"]], axis=1)
                           for l in layers]).astype(bf16),          # (L, H, 3H)
        "wo": jnp.stack([l["wo"] for l in layers]).astype(bf16),    # (L, H, H)
        "w1": jnp.stack([l["w1"] for l in layers]).astype(bf16),    # (L, H, I)
        "w2": jnp.stack([l["w2"] for l in layers]).astype(bf16),    # (L, I, H)
        "cls_w": cls_w_pad.astype(bf16),                            # (H, 128)
    }


# -------------------------------- forward pass ---------------------------------
def bert_for_sequence_tagging(packed, input_ids, attention_mask, token_type_ids):
    B, S = input_ids.shape
    bs = B * S
    idtt = jnp.stack([input_ids.reshape(bs), token_type_ids.reshape(bs)],
                     axis=1).astype(jnp.int32)                      # (bs, 2)
    mask = attention_mask.reshape(1, bs).astype(jnp.float32)        # (1, bs)

    args = (idtt, mask,
            packed["word_emb"], packed["pos_type"], packed["glob_vecs"],
            packed["layer_vecs"], packed["wqkv"], packed["wo"],
            packed["w1"], packed["w2"], packed["cls_w"])

    probs_pad = pl.pallas_call(
        functools.partial(_bert_kernel, batch=B, seq=S, n_layers=N_LAYERS,
                          n_heads=N_HEADS, head_dim=HEAD_DIM, hidden=HIDDEN,
                          inter=INTERMEDIATE, eps=LN_EPS),
        out_shape=jax.ShapeDtypeStruct((bs, PAD_LABELS), jnp.float32),
        in_specs=[_full_spec(a.shape) for a in args],
        out_specs=_full_spec((bs, PAD_LABELS)),
        scratch_shapes=[pltpu.VMEM((bs, HIDDEN), jnp.float32)],     # per-head ctx slab
    )(*args)

    # TODO(synk): labels != None branch (masked CrossEntropyLoss) not implemented;
    # this reproduces the labels=None inference path which returns softmax probs.
    return probs_pad[:, :NUM_LABELS].reshape(B, S, NUM_LABELS)


# ------------------------------------ main -------------------------------------
if __name__ == "__main__":
    key = jax.random.PRNGKey(0)
    pkey, ikey = jax.random.split(key)
    params = init_params(pkey)

    B, S = 2, 8
    packed = pack_params(params, B, S)

    input_ids = jax.random.randint(ikey, (B, S), 0, VOCAB, dtype=jnp.int32)
    attention_mask = jnp.array([[1, 1, 1, 1, 1, 1, 1, 1],
                                [1, 1, 1, 1, 1, 1, 0, 0]], dtype=jnp.int32)
    token_type_ids = jnp.zeros((B, S), dtype=jnp.int32)

    probs = bert_for_sequence_tagging(packed, input_ids, attention_mask,
                                      token_type_ids)
    probs = jax.block_until_ready(probs)

    assert probs.shape == (B, S, NUM_LABELS)
    assert bool(jnp.all(jnp.isfinite(probs)))
    assert bool(jnp.all(probs >= 0.0))
    row_sums = jnp.sum(probs, axis=-1)
    # exact division in the output softmax -> tight normalization check
    assert bool(jnp.allclose(row_sums, 1.0, atol=1e-5))
    print("KERNEL_OK")
</pallas_src>

<mosaic_0001>
module attributes {stable_mosaic.version = 11 : i64} {
  func.func @_bert_kernel(%arg0: memref<16x2xi32, #tpu.memory_space<vmem>>, %arg1: memref<1x16xf32, #tpu.memory_space<vmem>>, %arg2: memref<128x32xbf16, #tpu.memory_space<vmem>>, %arg3: memref<18x32xf32, #tpu.memory_space<vmem>>, %arg4: memref<3x128xf32, #tpu.memory_space<vmem>>, %arg5: memref<2x8x128xf32, #tpu.memory_space<vmem>>, %arg6: memref<2x32x96xbf16, #tpu.memory_space<vmem>>, %arg7: memref<2x32x32xbf16, #tpu.memory_space<vmem>>, %arg8: memref<2x32x64xbf16, #tpu.memory_space<vmem>>, %arg9: memref<2x64x32xbf16, #tpu.memory_space<vmem>>, %arg10: memref<32x128xbf16, #tpu.memory_space<vmem>>, %arg11: memref<16x128xf32, #tpu.memory_space<vmem>>, %arg12: memref<16x32xf32, #tpu.memory_space<vmem>>) attributes {dimension_semantics = [], scalar_prefetch = 0 : i64, scratch_operands = 1 : i64, tpu.core_type = #tpu.core_type<tc>} {
    %c0 = arith.constant 0 : index
    %c0_0 = arith.constant 0 : index
    %0 = vector.load %arg0[%c0, %c0_0] : memref<16x2xi32, #tpu.memory_space<vmem>>, vector<16x1xi32>
    %c0_1 = arith.constant 0 : index
    %c1 = arith.constant 1 : index
    %1 = vector.load %arg0[%c0_1, %c1] : memref<16x2xi32, #tpu.memory_space<vmem>>, vector<16x1xi32>
    %2 = tpu.iota {dimensions = array<i32: 1>} : vector<16x128xi32>
    %3 = vector.broadcast %0 : vector<16x1xi32> to vector<16x128xi32>
    %4 = arith.cmpi eq, %2, %3 : vector<16x128xi32>
    %5 = arith.extui %4 : vector<16x128xi1> to vector<16x128xi32>
    %6 = arith.sitofp %5 : vector<16x128xi32> to vector<16x128xf32>
    %7 = arith.truncf %6 : vector<16x128xf32> to vector<16x128xbf16>
    %c0_2 = arith.constant 0 : index
    %c0_3 = arith.constant 0 : index
    %8 = vector.load %arg2[%c0_2, %c0_3] : memref<128x32xbf16, #tpu.memory_space<vmem>>, vector<128x32xbf16>
    %cst = arith.constant dense<0.000000e+00> : vector<16x32xf32>
    %9 = tpu.matmul %7, %8, %cst {dimension_numbers = #tpu.dot_dimension_numbers<[1], [0], [0], [1], [0, 0, 1, 1], [], []>} : vector<16x128xbf16>, vector<128x32xbf16>, vector<16x32xf32> -> vector<16x32xf32>
    %c0_4 = arith.constant 0 : index
    %c0_5 = arith.constant 0 : index
    %10 = vector.load %arg3[%c0_4, %c0_5] : memref<18x32xf32, #tpu.memory_space<vmem>>, vector<16x32xf32>
    %cst_6 = arith.constant 0.000000e+00 : f32
    %11 = vector.broadcast %cst_6 : f32 to vector<16x32xf32>
    %c0_i32 = arith.constant 0 : i32
    %12 = vector.broadcast %c0_i32 : i32 to vector<16x1xi32>
    %13 = arith.cmpi eq, %1, %12 : vector<16x1xi32>
    %14 = arith.extui %13 : vector<16x1xi1> to vector<16x1xi32>
    %15 = arith.sitofp %14 : vector<16x1xi32> to vector<16x1xf32>
    %c16 = arith.constant 16 : index
    %c0_7 = arith.constant 0 : index
    %16 = vector.load %arg3[%c16, %c0_7] : memref<18x32xf32, #tpu.memory_space<vmem>>, vector<1x32xf32>
    %17 = vector.broadcast %15 : vector<16x1xf32> to vector<16x32xf32>
    %18 = vector.broadcast %16 : vector<1x32xf32> to vector<16x32xf32>
    %19 = arith.mulf %17, %18 : vector<16x32xf32>
    %20 = arith.addf %11, %19 : vector<16x32xf32>
    %c1_i32 = arith.constant 1 : i32
    %21 = vector.broadcast %c1_i32 : i32 to vector<16x1xi32>
    %22 = arith.cmpi eq, %1, %21 : vector<16x1xi32>
    %23 = arith.extui %22 : vector<16x1xi1> to vector<16x1xi32>
    %24 = arith.sitofp %23 : vector<16x1xi32> to vector<16x1xf32>
    %c17 = arith.constant 17 : index
    %c0_8 = arith.constant 0 : index
    %25 = vector.load %arg3[%c17, %c0_8] : memref<18x32xf32, #tpu.memory_space<vmem>>, vector<1x32xf32>
    %26 = vector.broadcast %24 : vector<16x1xf32> to vector<16x32xf32>
    %27 = vector.broadcast %25 : vector<1x32xf32> to vector<16x32xf32>
    %28 = arith.mulf %26, %27 : vector<16x32xf32>
    %29 = arith.addf %20, %28 : vector<16x32xf32>
    %30 = arith.addf %9, %10 : vector<16x32xf32>
    %31 = arith.addf %30, %29 : vector<16x32xf32>
    %c0_9 = arith.constant 0 : index
    %c0_10 = arith.constant 0 : index
    %32 = vector.load %arg4[%c0_9, %c0_10] : memref<3x128xf32, #tpu.memory_space<vmem>>, vector<1x32xf32>
    %c1_11 = arith.constant 1 : index
    %c0_12 = arith.constant 0 : index
    %33 = vector.load %arg4[%c1_11, %c0_12] : memref<3x128xf32, #tpu.memory_space<vmem>>, vector<1x32xf32>
    %cst_13 = arith.constant dense<0.000000e+00> : vector<16xf32>
    %34 = vector.multi_reduction <add>, %31, %cst_13 [1] : vector<16x32xf32> to vector<16xf32>
    %35 = vector.shape_cast %34 : vector<16xf32> to vector<16x1xf32>
    %cst_14 = arith.constant 3.200000e+01 : f32
    %36 = vector.broadcast %cst_14 : f32 to vector<16x1xf32>
    %37 = arith.divf %35, %36 : vector<16x1xf32>
    %38 = vector.broadcast %37 : vector<16x1xf32> to vector<16x32xf32>
    %39 = arith.subf %31, %38 : vector<16x32xf32>
    %40 = arith.mulf %39, %39 : vector<16x32xf32>
    %cst_15 = arith.constant dense<0.000000e+00> : vector<16xf32>
    %41 = vector.multi_reduction <add>, %40, %cst_15 [1] : vector<16x32xf32> to vector<16xf32>
    %42 = vector.shape_cast %41 : vector<16xf32> to vector<16x1xf32>
    %cst_16 = arith.constant 3.200000e+01 : f32
    %43 = vector.broadcast %cst_16 : f32 to vector<16x1xf32>
    %44 = arith.divf %42, %43 : vector<16x1xf32>
    %45 = vector.broadcast %37 : vector<16x1xf32> to vector<16x32xf32>
    %46 = arith.subf %31, %45 : vector<16x32xf32>
    %cst_17 = arith.constant 9.99999996E-13 : f32
    %47 = vector.broadcast %cst_17 : f32 to vector<16x1xf32>
    %48 = arith.addf %44, %47 : vector<16x1xf32>
    %49 = math.rsqrt %48 : vector<16x1xf32>
    %50 = vector.broadcast %49 : vector<16x1xf32> to vector<16x32xf32>
    %51 = arith.mulf %46, %50 : vector<16x32xf32>
    %52 = vector.broadcast %32 : vector<1x32xf32> to vector<16x32xf32>
    %53 = arith.mulf %51, %52 : vector<16x32xf32>
    %54 = vector.broadcast %33 : vector<1x32xf32> to vector<16x32xf32>
    %55 = arith.addf %53, %54 : vector<16x32xf32>
    %c0_18 = arith.constant 0 : index
    %c0_19 = arith.constant 0 : index
    %56 = vector.load %arg1[%c0_18, %c0_19] : memref<1x16xf32, #tpu.memory_space<vmem>>, vector<1x16xf32>
    %cst_20 = arith.constant 1.000000e+00 : f32
    %57 = vector.broadcast %cst_20 : f32 to vector<1x16xf32>
    %58 = arith.subf %57, %56 : vector<1x16xf32>
    %cst_21 = arith.constant -1.000000e+04 : f32
    %59 = vector.broadcast %cst_21 : f32 to vector<1x16xf32>
    %60 = arith.mulf %58, %59 : vector<1x16xf32>
    %61 = tpu.iota {dimensions = array<i32: 0>} : vector<16x16xi32>
    %62 = tpu.iota {dimensions = array<i32: 1>} : vector<16x16xi32>
    %c3_i32 = arith.constant 3 : i32
    %63 = vector.broadcast %c3_i32 : i32 to vector<16x16xi32>
    %64 = arith.shrsi %61, %63 : vector<16x16xi32>
    %c3_i32_22 = arith.constant 3 : i32
    %65 = vector.broadcast %c3_i32_22 : i32 to vector<16x16xi32>
    %66 = arith.shrsi %62, %65 : vector<16x16xi32>
    %67 = arith.cmpi eq, %64, %66 : vector<16x16xi32>
    %cst_23 = arith.constant -1.000000e+09 : f32
    %68 = vector.shape_cast %60 : vector<1x16xf32> to vector<1x16xf32>
    %69 = vector.broadcast %68 : vector<1x16xf32> to vector<16x16xf32>
    %70 = vector.broadcast %cst_23 : f32 to vector<16x16xf32>
    %71 = arith.select %67, %69, %70 : vector<16x16xi1>, vector<16x16xf32>
    %c0_24 = arith.constant 0 : index
    %c0_25 = arith.constant 0 : index
    %c0_26 = arith.constant 0 : index
    %72 = vector.load %arg6[%c0_24, %c0_25, %c0_26] : memref<2x32x96xbf16, #tpu.memory_space<vmem>>, vector<1x32x96xbf16>
    %73 = vector.shape_cast %72 : vector<1x32x96xbf16> to vector<32x96xbf16>
    %74 = arith.truncf %55 : vector<16x32xf32> to vector<16x32xbf16>
    %cst_27 = arith.constant dense<0.000000e+00> : vector<16x96xf32>
    %75 = tpu.matmul %74, %73, %cst_27 {dimension_numbers = #tpu.dot_dimension_numbers<[1], [0], [0], [1], [0, 0, 1, 1], [], []>} : vector<16x32xbf16>, vector<32x96xbf16>, vector<16x96xf32> -> vector<16x96xf32>
    %c0_28 = arith.constant 0 : index
    %c0_29 = arith.constant 0 : index
    %c0_30 = arith.constant 0 : index
    %76 = vector.load %arg5[%c0_28, %c0_29, %c0_30] : memref<2x8x128xf32, #tpu.memory_space<vmem>>, vector<1x1x96xf32>
    %77 = vector.shape_cast %76 : vector<1x1x96xf32> to vector<1x96xf32>
    %78 = vector.broadcast %77 : vector<1x96xf32> to vector<16x96xf32>
    %79 = arith.addf %75, %78 : vector<16x96xf32>
    %80 = vector.extract_strided_slice %79 {offsets = [0, 0], sizes = [16, 16], strides = [1, 1]} : vector<16x96xf32> to vector<16x16xf32>
    %81 = vector.extract_strided_slice %79 {offsets = [0, 32], sizes = [16, 16], strides = [1, 1]} : vector<16x96xf32> to vector<16x16xf32>
    %82 = vector.extract_strided_slice %79 {offsets = [0, 64], sizes = [16, 16], strides = [1, 1]} : vector<16x96xf32> to vector<16x16xf32>
    %83 = arith.truncf %80 : vector<16x16xf32> to vector<16x16xbf16>
    %84 = arith.truncf %81 : vector<16x16xf32> to vector<16x16xbf16>
    %cst_31 = arith.constant dense<0.000000e+00> : vector<16x16xf32>
    %85 = tpu.matmul %83, %84, %cst_31 {dimension_numbers = #tpu.dot_dimension_numbers<[1], [1], [0], [0], [0, 0, 1, 0], [], []>} : vector<16x16xbf16>, vector<16x16xbf16>, vector<16x16xf32> -> vector<16x16xf32>
    %cst_32 = arith.constant 2.500000e-01 : f32
    %86 = vector.broadcast %cst_32 : f32 to vector<16x16xf32>
    %87 = arith.mulf %85, %86 : vector<16x16xf32>
    %88 = arith.addf %87, %71 : vector<16x16xf32>
    %cst_33 = arith.constant dense<0xFF800000> : vector<16xf32>
    %89 = vector.multi_reduction <maximumf>, %88, %cst_33 [1] : vector<16x16xf32> to vector<16xf32>
    %90 = vector.shape_cast %89 : vector<16xf32> to vector<16x1xf32>
    %91 = vector.broadcast %90 : vector<16x1xf32> to vector<16x16xf32>
    %92 = arith.subf %88, %91 : vector<16x16xf32>
    %93 = math.exp %92 : vector<16x16xf32>
    %cst_34 = arith.constant dense<0.000000e+00> : vector<16xf32>
    %94 = vector.multi_reduction <add>, %93, %cst_34 [1] : vector<16x16xf32> to vector<16xf32>
    %95 = vector.shape_cast %94 : vector<16xf32> to vector<16x1xf32>
    %96 = tpu.reciprocal %95 {approx = true} : vector<16x1xf32> -> vector<16x1xf32>
    %97 = vector.broadcast %96 : vector<16x1xf32> to vector<16x16xf32>
    %98 = arith.mulf %93, %97 : vector<16x16xf32>
    %99 = arith.truncf %98 : vector<16x16xf32> to vector<16x16xbf16>
    %100 = arith.truncf %82 : vector<16x16xf32> to vector<16x16xbf16>
    %cst_35 = arith.constant dense<0.000000e+00> : vector<16x16xf32>
    %101 = tpu.matmul %99, %100, %cst_35 {dimension_numbers = #tpu.dot_dimension_numbers<[1], [0], [0], [1], [0, 0, 1, 1], [], []>} : vector<16x16xbf16>, vector<16x16xbf16>, vector<16x16xf32> -> vector<16x16xf32>
    %c0_36 = arith.constant 0 : index
    %c0_37 = arith.constant 0 : index
    %102 = vector.load %arg12[%c0_36, %c0_37] : memref<16x32xf32, #tpu.memory_space<vmem>>, vector<16x16xf32>
    tpu.vector_store %arg12[%c0_36, %c0_37], %101 {strides = array<i32>} : memref<16x32xf32, #tpu.memory_space<vmem>>, vector<16x16xf32>,
    %103 = vector.extract_strided_slice %79 {offsets = [0, 16], sizes = [16, 16], strides = [1, 1]} : vector<16x96xf32> to vector<16x16xf32>
    %104 = vector.extract_strided_slice %79 {offsets = [0, 48], sizes = [16, 16], strides = [1, 1]} : vector<16x96xf32> to vector<16x16xf32>
    %105 = vector.extract_strided_slice %79 {offsets = [0, 80], sizes = [16, 16], strides = [1, 1]} : vector<16x96xf32> to vector<16x16xf32>
    %106 = arith.truncf %103 : vector<16x16xf32> to vector<16x16xbf16>
    %107 = arith.truncf %104 : vector<16x16xf32> to vector<16x16xbf16>
    %cst_38 = arith.constant dense<0.000000e+00> : vector<16x16xf32>
    %108 = tpu.matmul %106, %107, %cst_38 {dimension_numbers = #tpu.dot_dimension_numbers<[1], [1], [0], [0], [0, 0, 1, 0], [], []>} : vector<16x16xbf16>, vector<16x16xbf16>, vector<16x16xf32> -> vector<16x16xf32>
    %cst_39 = arith.constant 2.500000e-01 : f32
    %109 = vector.broadcast %cst_39 : f32 to vector<16x16xf32>
    %110 = arith.mulf %108, %109 : vector<16x16xf32>
    %111 = arith.addf %110, %71 : vector<16x16xf32>
    %cst_40 = arith.constant dense<0xFF800000> : vector<16xf32>
    %112 = vector.multi_reduction <maximumf>, %111, %cst_40 [1] : vector<16x16xf32> to vector<16xf32>
    %113 = vector.shape_cast %112 : vector<16xf32> to vector<16x1xf32>
    %114 = vector.broadcast %113 : vector<16x1xf32> to vector<16x16xf32>
    %115 = arith.subf %111, %114 : vector<16x16xf32>
    %116 = math.exp %115 : vector<16x16xf32>
    %cst_41 = arith.constant dense<0.000000e+00> : vector<16xf32>
    %117 = vector.multi_reduction <add>, %116, %cst_41 [1] : vector<16x16xf32> to vector<16xf32>
    %118 = vector.shape_cast %117 : vector<16xf32> to vector<16x1xf32>
    %119 = tpu.reciprocal %118 {approx = true} : vector<16x1xf32> -> vector<16x1xf32>
    %120 = vector.broadcast %119 : vector<16x1xf32> to vector<16x16xf32>
    %121 = arith.mulf %116, %120 : vector<16x16xf32>
    %122 = arith.truncf %121 : vector<16x16xf32> to vector<16x16xbf16>
    %123 = arith.truncf %105 : vector<16x16xf32> to vector<16x16xbf16>
    %cst_42 = arith.constant dense<0.000000e+00> : vector<16x16xf32>
    %124 = tpu.matmul %122, %123, %cst_42 {dimension_numbers = #tpu.dot_dimension_numbers<[1], [0], [0], [1], [0, 0, 1, 1], [], []>} : vector<16x16xbf16>, vector<16x16xbf16>, vector<16x16xf32> -> vector<16x16xf32>
    %c0_43 = arith.constant 0 : index
    %c16_44 = arith.constant 16 : index
    %125 = vector.load %arg12[%c0_43, %c16_44] : memref<16x32xf32, #tpu.memory_space<vmem>>, vector<16x16xf32>
    tpu.vector_store %arg12[%c0_43, %c16_44], %124 {strides = array<i32>} : memref<16x32xf32, #tpu.memory_space<vmem>>, vector<16x16xf32>,
    %c0_45 = arith.constant 0 : index
    %c0_46 = arith.constant 0 : index
    %126 = vector.load %arg12[%c0_45, %c0_46] : memref<16x32xf32, #tpu.memory_space<vmem>>, vector<16x32xf32>
    %c0_47 = arith.constant 0 : index
    %c0_48 = arith.constant 0 : index
    %c0_49 = arith.constant 0 : index
    %127 = vector.load %arg7[%c0_47, %c0_48, %c0_49] : memref<2x32x32xbf16, #tpu.memory_space<vmem>>, vector<1x32x32xbf16>
    %128 = vector.shape_cast %127 : vector<1x32x32xbf16> to vector<32x32xbf16>
    %129 = arith.truncf %126 : vector<16x32xf32> to vector<16x32xbf16>
    %cst_50 = arith.constant dense<0.000000e+00> : vector<16x32xf32>
    %130 = tpu.matmul %129, %128, %cst_50 {dimension_numbers = #tpu.dot_dimension_numbers<[1], [0], [0], [1], [0, 0, 1, 1], [], []>} : vector<16x32xbf16>, vector<32x32xbf16>, vector<16x32xf32> -> vector<16x32xf32>
    %c0_51 = arith.constant 0 : index
    %c1_52 = arith.constant 1 : index
    %c0_53 = arith.constant 0 : index
    %131 = vector.load %arg5[%c0_51, %c1_52, %c0_53] : memref<2x8x128xf32, #tpu.memory_space<vmem>>, vector<1x1x32xf32>
    %132 = vector.shape_cast %131 : vector<1x1x32xf32> to vector<1x32xf32>
    %133 = vector.broadcast %132 : vector<1x32xf32> to vector<16x32xf32>
    %134 = arith.addf %130, %133 : vector<16x32xf32>
    %135 = arith.addf %134, %55 : vector<16x32xf32>
    %c0_54 = arith.constant 0 : index
    %c2 = arith.constant 2 : index
    %c0_55 = arith.constant 0 : index
    %136 = vector.load %arg5[%c0_54, %c2, %c0_55] : memref<2x8x128xf32, #tpu.memory_space<vmem>>, vector<1x1x32xf32>
    %137 = vector.shape_cast %136 : vector<1x1x32xf32> to vector<1x32xf32>
    %c0_56 = arith.constant 0 : index
    %c3 = arith.constant 3 : index
    %c0_57 = arith.constant 0 : index
    %138 = vector.load %arg5[%c0_56, %c3, %c0_57] : memref<2x8x128xf32, #tpu.memory_space<vmem>>, vector<1x1x32xf32>
    %139 = vector.shape_cast %138 : vector<1x1x32xf32> to vector<1x32xf32>
    %cst_58 = arith.constant dense<0.000000e+00> : vector<16xf32>
    %140 = vector.multi_reduction <add>, %135, %cst_58 [1] : vector<16x32xf32> to vector<16xf32>
    %141 = vector.shape_cast %140 : vector<16xf32> to vector<16x1xf32>
    %cst_59 = arith.constant 3.200000e+01 : f32
    %142 = vector.broadcast %cst_59 : f32 to vector<16x1xf32>
    %143 = arith.divf %141, %142 : vector<16x1xf32>
    %144 = vector.broadcast %143 : vector<16x1xf32> to vector<16x32xf32>
    %145 = arith.subf %135, %144 : vector<16x32xf32>
    %146 = arith.mulf %145, %145 : vector<16x32xf32>
    %cst_60 = arith.constant dense<0.000000e+00> : vector<16xf32>
    %147 = vector.multi_reduction <add>, %146, %cst_60 [1] : vector<16x32xf32> to vector<16xf32>
    %148 = vector.shape_cast %147 : vector<16xf32> to vector<16x1xf32>
    %cst_61 = arith.constant 3.200000e+01 : f32
    %149 = vector.broadcast %cst_61 : f32 to vector<16x1xf32>
    %150 = arith.divf %148, %149 : vector<16x1xf32>
    %151 = vector.broadcast %143 : vector<16x1xf32> to vector<16x32xf32>
    %152 = arith.subf %135, %151 : vector<16x32xf32>
    %cst_62 = arith.constant 9.99999996E-13 : f32
    %153 = vector.broadcast %cst_62 : f32 to vector<16x1xf32>
    %154 = arith.addf %150, %153 : vector<16x1xf32>
    %155 = math.rsqrt %154 : vector<16x1xf32>
    %156 = vector.broadcast %155 : vector<16x1xf32> to vector<16x32xf32>
    %157 = arith.mulf %152, %156 : vector<16x32xf32>
    %158 = vector.broadcast %137 : vector<1x32xf32> to vector<16x32xf32>
    %159 = arith.mulf %157, %158 : vector<16x32xf32>
    %160 = vector.broadcast %139 : vector<1x32xf32> to vector<16x32xf32>
    %161 = arith.addf %159, %160 : vector<16x32xf32>
    %c0_63 = arith.constant 0 : index
    %c0_64 = arith.constant 0 : index
    %c0_65 = arith.constant 0 : index
    %162 = vector.load %arg8[%c0_63, %c0_64, %c0_65] : memref<2x32x64xbf16, #tpu.memory_space<vmem>>, vector<1x32x64xbf16>
    %163 = vector.shape_cast %162 : vector<1x32x64xbf16> to vector<32x64xbf16>
    %164 = arith.truncf %161 : vector<16x32xf32> to vector<16x32xbf16>
    %cst_66 = arith.constant dense<0.000000e+00> : vector<16x64xf32>
    %165 = tpu.matmul %164, %163, %cst_66 {dimension_numbers = #tpu.dot_dimension_numbers<[1], [0], [0], [1], [0, 0, 1, 1], [], []>} : vector<16x32xbf16>, vector<32x64xbf16>, vector<16x64xf32> -> vector<16x64xf32>
    %c0_67 = arith.constant 0 : index
    %c4 = arith.constant 4 : index
    %c0_68 = arith.constant 0 : index
    %166 = vector.load %arg5[%c0_67, %c4, %c0_68] : memref<2x8x128xf32, #tpu.memory_space<vmem>>, vector<1x1x64xf32>
    %167 = vector.shape_cast %166 : vector<1x1x64xf32> to vector<1x64xf32>
    %168 = vector.broadcast %167 : vector<1x64xf32> to vector<16x64xf32>
    %169 = arith.addf %165, %168 : vector<16x64xf32>
    %170 = arith.mulf %169, %169 : vector<16x64xf32>
    %171 = arith.mulf %169, %170 : vector<16x64xf32>
    %cst_69 = arith.constant 4.471500e-02 : f32
    %172 = vector.broadcast %cst_69 : f32 to vector<16x64xf32>
    %173 = arith.mulf %172, %171 : vector<16x64xf32>
    %174 = arith.addf %169, %173 : vector<16x64xf32>
    %cst_70 = arith.constant 0.797884583 : f32
    %175 = vector.broadcast %cst_70 : f32 to vector<16x64xf32>
    %176 = arith.mulf %175, %174 : vector<16x64xf32>
    %177 = math.tanh %176 : vector<16x64xf32>
    %cst_71 = arith.constant 1.000000e+00 : f32
    %178 = vector.broadcast %cst_71 : f32 to vector<16x64xf32>
    %179 = arith.addf %178, %177 : vector<16x64xf32>
    %cst_72 = arith.constant 5.000000e-01 : f32
    %180 = vector.broadcast %cst_72 : f32 to vector<16x64xf32>
    %181 = arith.mulf %180, %179 : vector<16x64xf32>
    %182 = arith.mulf %169, %181 : vector<16x64xf32>
    %c0_73 = arith.constant 0 : index
    %c0_74 = arith.constant 0 : index
    %c0_75 = arith.constant 0 : index
    %183 = vector.load %arg9[%c0_73, %c0_74, %c0_75] : memref<2x64x32xbf16, #tpu.memory_space<vmem>>, vector<1x64x32xbf16>
    %184 = vector.shape_cast %183 : vector<1x64x32xbf16> to vector<64x32xbf16>
    %185 = arith.truncf %182 : vector<16x64xf32> to vector<16x64xbf16>
    %cst_76 = arith.constant dense<0.000000e+00> : vector<16x32xf32>
    %186 = tpu.matmul %185, %184, %cst_76 {dimension_numbers = #tpu.dot_dimension_numbers<[1], [0], [0], [1], [0, 0, 1, 1], [], []>} : vector<16x64xbf16>, vector<64x32xbf16>, vector<16x32xf32> -> vector<16x32xf32>
    %c0_77 = arith.constant 0 : index
    %c5 = arith.constant 5 : index
    %c0_78 = arith.constant 0 : index
    %187 = vector.load %arg5[%c0_77, %c5, %c0_78] : memref<2x8x128xf32, #tpu.memory_space<vmem>>, vector<1x1x32xf32>
    %188 = vector.shape_cast %187 : vector<1x1x32xf32> to vector<1x32xf32>
    %189 = vector.broadcast %188 : vector<1x32xf32> to vector<16x32xf32>
    %190 = arith.addf %186, %189 : vector<16x32xf32>
    %191 = arith.addf %190, %161 : vector<16x32xf32>
    %c0_79 = arith.constant 0 : index
    %c6 = arith.constant 6 : index
    %c0_80 = arith.constant 0 : index
    %192 = vector.load %arg5[%c0_79, %c6, %c0_80] : memref<2x8x128xf32, #tpu.memory_space<vmem>>, vector<1x1x32xf32>
    %193 = vector.shape_cast %192 : vector<1x1x32xf32> to vector<1x32xf32>
    %c0_81 = arith.constant 0 : index
    %c7 = arith.constant 7 : index
    %c0_82 = arith.constant 0 : index
    %194 = vector.load %arg5[%c0_81, %c7, %c0_82] : memref<2x8x128xf32, #tpu.memory_space<vmem>>, vector<1x1x32xf32>
    %195 = vector.shape_cast %194 : vector<1x1x32xf32> to vector<1x32xf32>
    %cst_83 = arith.constant dense<0.000000e+00> : vector<16xf32>
    %196 = vector.multi_reduction <add>, %191, %cst_83 [1] : vector<16x32xf32> to vector<16xf32>
    %197 = vector.shape_cast %196 : vector<16xf32> to vector<16x1xf32>
    %cst_84 = arith.constant 3.200000e+01 : f32
    %198 = vector.broadcast %cst_84 : f32 to vector<16x1xf32>
    %199 = arith.divf %197, %198 : vector<16x1xf32>
    %200 = vector.broadcast %199 : vector<16x1xf32> to vector<16x32xf32>
    %201 = arith.subf %191, %200 : vector<16x32xf32>
    %202 = arith.mulf %201, %201 : vector<16x32xf32>
    %cst_85 = arith.constant dense<0.000000e+00> : vector<16xf32>
    %203 = vector.multi_reduction <add>, %202, %cst_85 [1] : vector<16x32xf32> to vector<16xf32>
    %204 = vector.shape_cast %203 : vector<16xf32> to vector<16x1xf32>
    %cst_86 = arith.constant 3.200000e+01 : f32
    %205 = vector.broadcast %cst_86 : f32 to vector<16x1xf32>
    %206 = arith.divf %204, %205 : vector<16x1xf32>
    %207 = vector.broadcast %199 : vector<16x1xf32> to vector<16x32xf32>
    %208 = arith.subf %191, %207 : vector<16x32xf32>
    %cst_87 = arith.constant 9.99999996E-13 : f32
    %209 = vector.broadcast %cst_87 : f32 to vector<16x1xf32>
    %210 = arith.addf %206, %209 : vector<16x1xf32>
    %211 = math.rsqrt %210 : vector<16x1xf32>
    %212 = vector.broadcast %211 : vector<16x1xf32> to vector<16x32xf32>
    %213 = arith.mulf %208, %212 : vector<16x32xf32>
    %214 = vector.broadcast %193 : vector<1x32xf32> to vector<16x32xf32>
    %215 = arith.mulf %213, %214 : vector<16x32xf32>
    %216 = vector.broadcast %195 : vector<1x32xf32> to vector<16x32xf32>
    %217 = arith.addf %215, %216 : vector<16x32xf32>
    %c1_88 = arith.constant 1 : index
    %c0_89 = arith.constant 0 : index
    %c0_90 = arith.constant 0 : index
    %218 = vector.load %arg6[%c1_88, %c0_89, %c0_90] : memref<2x32x96xbf16, #tpu.memory_space<vmem>>, vector<1x32x96xbf16>
    %219 = vector.shape_cast %218 : vector<1x32x96xbf16> to vector<32x96xbf16>
    %220 = arith.truncf %217 : vector<16x32xf32> to vector<16x32xbf16>
    %cst_91 = arith.constant dense<0.000000e+00> : vector<16x96xf32>
    %221 = tpu.matmul %220, %219, %cst_91 {dimension_numbers = #tpu.dot_dimension_numbers<[1], [0], [0], [1], [0, 0, 1, 1], [], []>} : vector<16x32xbf16>, vector<32x96xbf16>, vector<16x96xf32> -> vector<16x96xf32>
    %c1_92 = arith.constant 1 : index
    %c0_93 = arith.constant 0 : index
    %c0_94 = arith.constant 0 : index
    %222 = vector.load %arg5[%c1_92, %c0_93, %c0_94] : memref<2x8x128xf32, #tpu.memory_space<vmem>>, vector<1x1x96xf32>
    %223 = vector.shape_cast %222 : vector<1x1x96xf32> to vector<1x96xf32>
    %224 = vector.broadcast %223 : vector<1x96xf32> to vector<16x96xf32>
    %225 = arith.addf %221, %224 : vector<16x96xf32>
    %226 = vector.extract_strided_slice %225 {offsets = [0, 0], sizes = [16, 16], strides = [1, 1]} : vector<16x96xf32> to vector<16x16xf32>
    %227 = vector.extract_strided_slice %225 {offsets = [0, 32], sizes = [16, 16], strides = [1, 1]} : vector<16x96xf32> to vector<16x16xf32>
    %228 = vector.extract_strided_slice %225 {offsets = [0, 64], sizes = [16, 16], strides = [1, 1]} : vector<16x96xf32> to vector<16x16xf32>
    %229 = arith.truncf %226 : vector<16x16xf32> to vector<16x16xbf16>
    %230 = arith.truncf %227 : vector<16x16xf32> to vector<16x16xbf16>
    %cst_95 = arith.constant dense<0.000000e+00> : vector<16x16xf32>
    %231 = tpu.matmul %229, %230, %cst_95 {dimension_numbers = #tpu.dot_dimension_numbers<[1], [1], [0], [0], [0, 0, 1, 0], [], []>} : vector<16x16xbf16>, vector<16x16xbf16>, vector<16x16xf32> -> vector<16x16xf32>
    %cst_96 = arith.constant 2.500000e-01 : f32
    %232 = vector.broadcast %cst_96 : f32 to vector<16x16xf32>
    %233 = arith.mulf %231, %232 : vector<16x16xf32>
    %234 = arith.addf %233, %71 : vector<16x16xf32>
    %cst_97 = arith.constant dense<0xFF800000> : vector<16xf32>
    %235 = vector.multi_reduction <maximumf>, %234, %cst_97 [1] : vector<16x16xf32> to vector<16xf32>
    %236 = vector.shape_cast %235 : vector<16xf32> to vector<16x1xf32>
    %237 = vector.broadcast %236 : vector<16x1xf32> to vector<16x16xf32>
    %238 = arith.subf %234, %237 : vector<16x16xf32>
    %239 = math.exp %238 : vector<16x16xf32>
    %cst_98 = arith.constant dense<0.000000e+00> : vector<16xf32>
    %240 = vector.multi_reduction <add>, %239, %cst_98 [1] : vector<16x16xf32> to vector<16xf32>
    %241 = vector.shape_cast %240 : vector<16xf32> to vector<16x1xf32>
    %242 = tpu.reciprocal %241 {approx = true} : vector<16x1xf32> -> vector<16x1xf32>
    %243 = vector.broadcast %242 : vector<16x1xf32> to vector<16x16xf32>
    %244 = arith.mulf %239, %243 : vector<16x16xf32>
    %245 = arith.truncf %244 : vector<16x16xf32> to vector<16x16xbf16>
    %246 = arith.truncf %228 : vector<16x16xf32> to vector<16x16xbf16>
    %cst_99 = arith.constant dense<0.000000e+00> : vector<16x16xf32>
    %247 = tpu.matmul %245, %246, %cst_99 {dimension_numbers = #tpu.dot_dimension_numbers<[1], [0], [0], [1], [0, 0, 1, 1], [], []>} : vector<16x16xbf16>, vector<16x16xbf16>, vector<16x16xf32> -> vector<16x16xf32>
    %c0_100 = arith.constant 0 : index
    %c0_101 = arith.constant 0 : index
    %248 = vector.load %arg12[%c0_100, %c0_101] : memref<16x32xf32, #tpu.memory_space<vmem>>, vector<16x16xf32>
    tpu.vector_store %arg12[%c0_100, %c0_101], %247 {strides = array<i32>} : memref<16x32xf32, #tpu.memory_space<vmem>>, vector<16x16xf32>,
    %249 = vector.extract_strided_slice %225 {offsets = [0, 16], sizes = [16, 16], strides = [1, 1]} : vector<16x96xf32> to vector<16x16xf32>
    %250 = vector.extract_strided_slice %225 {offsets = [0, 48], sizes = [16, 16], strides = [1, 1]} : vector<16x96xf32> to vector<16x16xf32>
    %251 = vector.extract_strided_slice %225 {offsets = [0, 80], sizes = [16, 16], strides = [1, 1]} : vector<16x96xf32> to vector<16x16xf32>
    %252 = arith.truncf %249 : vector<16x16xf32> to vector<16x16xbf16>
    %253 = arith.truncf %250 : vector<16x16xf32> to vector<16x16xbf16>
    %cst_102 = arith.constant dense<0.000000e+00> : vector<16x16xf32>
    %254 = tpu.matmul %252, %253, %cst_102 {dimension_numbers = #tpu.dot_dimension_numbers<[1], [1], [0], [0], [0, 0, 1, 0], [], []>} : vector<16x16xbf16>, vector<16x16xbf16>, vector<16x16xf32> -> vector<16x16xf32>
    %cst_103 = arith.constant 2.500000e-01 : f32
    %255 = vector.broadcast %cst_103 : f32 to vector<16x16xf32>
    %256 = arith.mulf %254, %255 : vector<16x16xf32>
    %257 = arith.addf %256, %71 : vector<16x16xf32>
    %cst_104 = arith.constant dense<0xFF800000> : vector<16xf32>
    %258 = vector.multi_reduction <maximumf>, %257, %cst_104 [1] : vector<16x16xf32> to vector<16xf32>
    %259 = vector.shape_cast %258 : vector<16xf32> to vector<16x1xf32>
    %260 = vector.broadcast %259 : vector<16x1xf32> to vector<16x16xf32>
    %261 = arith.subf %257, %260 : vector<16x16xf32>
    %262 = math.exp %261 : vector<16x16xf32>
    %cst_105 = arith.constant dense<0.000000e+00> : vector<16xf32>
    %263 = vector.multi_reduction <add>, %262, %cst_105 [1] : vector<16x16xf32> to vector<16xf32>
    %264 = vector.shape_cast %263 : vector<16xf32> to vector<16x1xf32>
    %265 = tpu.reciprocal %264 {approx = true} : vector<16x1xf32> -> vector<16x1xf32>
    %266 = vector.broadcast %265 : vector<16x1xf32> to vector<16x16xf32>
    %267 = arith.mulf %262, %266 : vector<16x16xf32>
    %268 = arith.truncf %267 : vector<16x16xf32> to vector<16x16xbf16>
    %269 = arith.truncf %251 : vector<16x16xf32> to vector<16x16xbf16>
    %cst_106 = arith.constant dense<0.000000e+00> : vector<16x16xf32>
    %270 = tpu.matmul %268, %269, %cst_106 {dimension_numbers = #tpu.dot_dimension_numbers<[1], [0], [0], [1], [0, 0, 1, 1], [], []>} : vector<16x16xbf16>, vector<16x16xbf16>, vector<16x16xf32> -> vector<16x16xf32>
    %c0_107 = arith.constant 0 : index
    %c16_108 = arith.constant 16 : index
    %271 = vector.load %arg12[%c0_107, %c16_108] : memref<16x32xf32, #tpu.memory_space<vmem>>, vector<16x16xf32>
    tpu.vector_store %arg12[%c0_107, %c16_108], %270 {strides = array<i32>} : memref<16x32xf32, #tpu.memory_space<vmem>>, vector<16x16xf32>,
    %c0_109 = arith.constant 0 : index
    %c0_110 = arith.constant 0 : index
    %272 = vector.load %arg12[%c0_109, %c0_110] : memref<16x32xf32, #tpu.memory_space<vmem>>, vector<16x32xf32>
    %c1_111 = arith.constant 1 : index
    %c0_112 = arith.constant 0 : index
    %c0_113 = arith.constant 0 : index
    %273 = vector.load %arg7[%c1_111, %c0_112, %c0_113] : memref<2x32x32xbf16, #tpu.memory_space<vmem>>, vector<1x32x32xbf16>
    %274 = vector.shape_cast %273 : vector<1x32x32xbf16> to vector<32x32xbf16>
    %275 = arith.truncf %272 : vector<16x32xf32> to vector<16x32xbf16>
    %cst_114 = arith.constant dense<0.000000e+00> : vector<16x32xf32>
    %276 = tpu.matmul %275, %274, %cst_114 {dimension_numbers = #tpu.dot_dimension_numbers<[1], [0], [0], [1], [0, 0, 1, 1], [], []>} : vector<16x32xbf16>, vector<32x32xbf16>, vector<16x32xf32> -> vector<16x32xf32>
    %c1_115 = arith.constant 1 : index
    %c1_116 = arith.constant 1 : index
    %c0_117 = arith.constant 0 : index
    %277 = vector.load %arg5[%c1_115, %c1_116, %c0_117] : memref<2x8x128xf32, #tpu.memory_space<vmem>>, vector<1x1x32xf32>
    %278 = vector.shape_cast %277 : vector<1x1x32xf32> to vector<1x32xf32>
    %279 = vector.broadcast %278 : vector<1x32xf32> to vector<16x32xf32>
    %280 = arith.addf %276, %279 : vector<16x32xf32>
    %281 = arith.addf %280, %217 : vector<16x32xf32>
    %c1_118 = arith.constant 1 : index
    %c2_119 = arith.constant 2 : index
    %c0_120 = arith.constant 0 : index
    %282 = vector.load %arg5[%c1_118, %c2_119, %c0_120] : memref<2x8x128xf32, #tpu.memory_space<vmem>>, vector<1x1x32xf32>
    %283 = vector.shape_cast %282 : vector<1x1x32xf32> to vector<1x32xf32>
    %c1_121 = arith.constant 1 : index
    %c3_122 = arith.constant 3 : index
    %c0_123 = arith.constant 0 : index
    %284 = vector.load %arg5[%c1_121, %c3_122, %c0_123] : memref<2x8x128xf32, #tpu.memory_space<vmem>>, vector<1x1x32xf32>
    %285 = vector.shape_cast %284 : vector<1x1x32xf32> to vector<1x32xf32>
    %cst_124 = arith.constant dense<0.000000e+00> : vector<16xf32>
    %286 = vector.multi_reduction <add>, %281, %cst_124 [1] : vector<16x32xf32> to vector<16xf32>
    %287 = vector.shape_cast %286 : vector<16xf32> to vector<16x1xf32>
    %cst_125 = arith.constant 3.200000e+01 : f32
    %288 = vector.broadcast %cst_125 : f32 to vector<16x1xf32>
    %289 = arith.divf %287, %288 : vector<16x1xf32>
    %290 = vector.broadcast %289 : vector<16x1xf32> to vector<16x32xf32>
    %291 = arith.subf %281, %290 : vector<16x32xf32>
    %292 = arith.mulf %291, %291 : vector<16x32xf32>
    %cst_126 = arith.constant dense<0.000000e+00> : vector<16xf32>
    %293 = vector.multi_reduction <add>, %292, %cst_126 [1] : vector<16x32xf32> to vector<16xf32>
    %294 = vector.shape_cast %293 : vector<16xf32> to vector<16x1xf32>
    %cst_127 = arith.constant 3.200000e+01 : f32
    %295 = vector.broadcast %cst_127 : f32 to vector<16x1xf32>
    %296 = arith.divf %294, %295 : vector<16x1xf32>
    %297 = vector.broadcast %289 : vector<16x1xf32> to vector<16x32xf32>
    %298 = arith.subf %281, %297 : vector<16x32xf32>
    %cst_128 = arith.constant 9.99999996E-13 : f32
    %299 = vector.broadcast %cst_128 : f32 to vector<16x1xf32>
    %300 = arith.addf %296, %299 : vector<16x1xf32>
    %301 = math.rsqrt %300 : vector<16x1xf32>
    %302 = vector.broadcast %301 : vector<16x1xf32> to vector<16x32xf32>
    %303 = arith.mulf %298, %302 : vector<16x32xf32>
    %304 = vector.broadcast %283 : vector<1x32xf32> to vector<16x32xf32>
    %305 = arith.mulf %303, %304 : vector<16x32xf32>
    %306 = vector.broadcast %285 : vector<1x32xf32> to vector<16x32xf32>
    %307 = arith.addf %305, %306 : vector<16x32xf32>
    %c1_129 = arith.constant 1 : index
    %c0_130 = arith.constant 0 : index
    %c0_131 = arith.constant 0 : index
    %308 = vector.load %arg8[%c1_129, %c0_130, %c0_131] : memref<2x32x64xbf16, #tpu.memory_space<vmem>>, vector<1x32x64xbf16>
    %309 = vector.shape_cast %308 : vector<1x32x64xbf16> to vector<32x64xbf16>
    %310 = arith.truncf %307 : vector<16x32xf32> to vector<16x32xbf16>
    %cst_132 = arith.constant dense<0.000000e+00> : vector<16x64xf32>
    %311 = tpu.matmul %310, %309, %cst_132 {dimension_numbers = #tpu.dot_dimension_numbers<[1], [0], [0], [1], [0, 0, 1, 1], [], []>} : vector<16x32xbf16>, vector<32x64xbf16>, vector<16x64xf32> -> vector<16x64xf32>
    %c1_133 = arith.constant 1 : index
    %c4_134 = arith.constant 4 : index
    %c0_135 = arith.constant 0 : index
    %312 = vector.load %arg5[%c1_133, %c4_134, %c0_135] : memref<2x8x128xf32, #tpu.memory_space<vmem>>, vector<1x1x64xf32>
    %313 = vector.shape_cast %312 : vector<1x1x64xf32> to vector<1x64xf32>
    %314 = vector.broadcast %313 : vector<1x64xf32> to vector<16x64xf32>
    %315 = arith.addf %311, %314 : vector<16x64xf32>
    %316 = arith.mulf %315, %315 : vector<16x64xf32>
    %317 = arith.mulf %315, %316 : vector<16x64xf32>
    %cst_136 = arith.constant 4.471500e-02 : f32
    %318 = vector.broadcast %cst_136 : f32 to vector<16x64xf32>
    %319 = arith.mulf %318, %317 : vector<16x64xf32>
    %320 = arith.addf %315, %319 : vector<16x64xf32>
    %cst_137 = arith.constant 0.797884583 : f32
    %321 = vector.broadcast %cst_137 : f32 to vector<16x64xf32>
    %322 = arith.mulf %321, %320 : vector<16x64xf32>
    %323 = math.tanh %322 : vector<16x64xf32>
    %cst_138 = arith.constant 1.000000e+00 : f32
    %324 = vector.broadcast %cst_138 : f32 to vector<16x64xf32>
    %325 = arith.addf %324, %323 : vector<16x64xf32>
    %cst_139 = arith.constant 5.000000e-01 : f32
    %326 = vector.broadcast %cst_139 : f32 to vector<16x64xf32>
    %327 = arith.mulf %326, %325 : vector<16x64xf32>
    %328 = arith.mulf %315, %327 : vector<16x64xf32>
    %c1_140 = arith.constant 1 : index
    %c0_141 = arith.constant 0 : index
    %c0_142 = arith.constant 0 : index
    %329 = vector.load %arg9[%c1_140, %c0_141, %c0_142] : memref<2x64x32xbf16, #tpu.memory_space<vmem>>, vector<1x64x32xbf16>
    %330 = vector.shape_cast %329 : vector<1x64x32xbf16> to vector<64x32xbf16>
    %331 = arith.truncf %328 : vector<16x64xf32> to vector<16x64xbf16>
    %cst_143 = arith.constant dense<0.000000e+00> : vector<16x32xf32>
    %332 = tpu.matmul %331, %330, %cst_143 {dimension_numbers = #tpu.dot_dimension_numbers<[1], [0], [0], [1], [0, 0, 1, 1], [], []>} : vector<16x64xbf16>, vector<64x32xbf16>, vector<16x32xf32> -> vector<16x32xf32>
    %c1_144 = arith.constant 1 : index
    %c5_145 = arith.constant 5 : index
    %c0_146 = arith.constant 0 : index
    %333 = vector.load %arg5[%c1_144, %c5_145, %c0_146] : memref<2x8x128xf32, #tpu.memory_space<vmem>>, vector<1x1x32xf32>
    %334 = vector.shape_cast %333 : vector<1x1x32xf32> to vector<1x32xf32>
    %335 = vector.broadcast %334 : vector<1x32xf32> to vector<16x32xf32>
    %336 = arith.addf %332, %335 : vector<16x32xf32>
    %337 = arith.addf %336, %307 : vector<16x32xf32>
    %c1_147 = arith.constant 1 : index
    %c6_148 = arith.constant 6 : index
    %c0_149 = arith.constant 0 : index
    %338 = vector.load %arg5[%c1_147, %c6_148, %c0_149] : memref<2x8x128xf32, #tpu.memory_space<vmem>>, vector<1x1x32xf32>
    %339 = vector.shape_cast %338 : vector<1x1x32xf32> to vector<1x32xf32>
    %c1_150 = arith.constant 1 : index
    %c7_151 = arith.constant 7 : index
    %c0_152 = arith.constant 0 : index
    %340 = vector.load %arg5[%c1_150, %c7_151, %c0_152] : memref<2x8x128xf32, #tpu.memory_space<vmem>>, vector<1x1x32xf32>
    %341 = vector.shape_cast %340 : vector<1x1x32xf32> to vector<1x32xf32>
    %cst_153 = arith.constant dense<0.000000e+00> : vector<16xf32>
    %342 = vector.multi_reduction <add>, %337, %cst_153 [1] : vector<16x32xf32> to vector<16xf32>
    %343 = vector.shape_cast %342 : vector<16xf32> to vector<16x1xf32>
    %cst_154 = arith.constant 3.200000e+01 : f32
    %344 = vector.broadcast %cst_154 : f32 to vector<16x1xf32>
    %345 = arith.divf %343, %344 : vector<16x1xf32>
    %346 = vector.broadcast %345 : vector<16x1xf32> to vector<16x32xf32>
    %347 = arith.subf %337, %346 : vector<16x32xf32>
    %348 = arith.mulf %347, %347 : vector<16x32xf32>
    %cst_155 = arith.constant dense<0.000000e+00> : vector<16xf32>
    %349 = vector.multi_reduction <add>, %348, %cst_155 [1] : vector<16x32xf32> to vector<16xf32>
    %350 = vector.shape_cast %349 : vector<16xf32> to vector<16x1xf32>
    %cst_156 = arith.constant 3.200000e+01 : f32
    %351 = vector.broadcast %cst_156 : f32 to vector<16x1xf32>
    %352 = arith.divf %350, %351 : vector<16x1xf32>
    %353 = vector.broadcast %345 : vector<16x1xf32> to vector<16x32xf32>
    %354 = arith.subf %337, %353 : vector<16x32xf32>
    %cst_157 = arith.constant 9.99999996E-13 : f32
    %355 = vector.broadcast %cst_157 : f32 to vector<16x1xf32>
    %356 = arith.addf %352, %355 : vector<16x1xf32>
    %357 = math.rsqrt %356 : vector<16x1xf32>
    %358 = vector.broadcast %357 : vector<16x1xf32> to vector<16x32xf32>
    %359 = arith.mulf %354, %358 : vector<16x32xf32>
    %360 = vector.broadcast %339 : vector<1x32xf32> to vector<16x32xf32>
    %361 = arith.mulf %359, %360 : vector<16x32xf32>
    %362 = vector.broadcast %341 : vector<1x32xf32> to vector<16x32xf32>
    %363 = arith.addf %361, %362 : vector<16x32xf32>
    %c0_158 = arith.constant 0 : index
    %c0_159 = arith.constant 0 : index
    %364 = vector.load %arg10[%c0_158, %c0_159] : memref<32x128xbf16, #tpu.memory_space<vmem>>, vector<32x128xbf16>
    %365 = arith.truncf %363 : vector<16x32xf32> to vector<16x32xbf16>
    %cst_160 = arith.constant dense<0.000000e+00> : vector<16x128xf32>
    %366 = tpu.matmul %365, %364, %cst_160 {dimension_numbers = #tpu.dot_dimension_numbers<[1], [0], [0], [1], [0, 0, 1, 1], [], []>} : vector<16x32xbf16>, vector<32x128xbf16>, vector<16x128xf32> -> vector<16x128xf32>
    %c2_161 = arith.constant 2 : index
    %c0_162 = arith.constant 0 : index
    %367 = vector.load %arg4[%c2_161, %c0_162] : memref<3x128xf32, #tpu.memory_space<vmem>>, vector<1x128xf32>
    %368 = vector.broadcast %367 : vector<1x128xf32> to vector<16x128xf32>
    %369 = arith.addf %366, %368 : vector<16x128xf32>
    %cst_163 = arith.constant dense<0xFF800000> : vector<16xf32>
    %370 = vector.multi_reduction <maximumf>, %369, %cst_163 [1] : vector<16x128xf32> to vector<16xf32>
    %371 = vector.shape_cast %370 : vector<16xf32> to vector<16x1xf32>
    %372 = vector.broadcast %371 : vector<16x1xf32> to vector<16x128xf32>
    %373 = arith.subf %369, %372 : vector<16x128xf32>
    %374 = math.exp %373 : vector<16x128xf32>
    %cst_164 = arith.constant dense<0.000000e+00> : vector<16xf32>
    %375 = vector.multi_reduction <add>, %374, %cst_164 [1] : vector<16x128xf32> to vector<16xf32>
    %376 = vector.shape_cast %375 : vector<16xf32> to vector<16x1xf32>
    %377 = vector.broadcast %376 : vector<16x1xf32> to vector<16x128xf32>
    %378 = arith.divf %374, %377 : vector<16x128xf32>
    %c0_165 = arith.constant 0 : index
    %c0_166 = arith.constant 0 : index
    %379 = vector.load %arg11[%c0_165, %c0_166] : memref<16x128xf32, #tpu.memory_space<vmem>>, vector<16x128xf32>
    tpu.vector_store %arg11[%c0_165, %c0_166], %378 {strides = array<i32>} : memref<16x128xf32, #tpu.memory_space<vmem>>, vector<16x128xf32>,
    return
  }
}

</mosaic_0001>

<llo_original>
// kernel: tpu_custom_call.1
$region0: #{tpu_custom_call.1}
  #allocation0 [shape = 'u32[]', space=smem, size = 0x4, offset = 0x4, fixed_abs, tag = 'smem constant byte address 0x4 - core index']
  #allocation1 [shape = 'u32[144,128]{1,0:T(1,128)}', space=vmem, size = 0x12000, scoped, tag = 'internal scratch']
  #allocation2 [shape = 'f32[16,32]{1,0:T(8,128)}', space=vmem, size = 0x2000, scoped, tag = 'scratch operand']
  %s0 = inlined_call_operand.vmem [shape: s32[16,2], index: 0, kind: input, shape index: {}]
  %s1 = inlined_call_operand.vmem [shape: f32[1,16], index: 1, kind: input, shape index: {}]
  %s2 = inlined_call_operand.vmem [shape: bf16[128,32], index: 2, kind: input, shape index: {}]
  %s3 = inlined_call_operand.vmem [shape: f32[18,32], index: 3, kind: input, shape index: {}]
  %s4 = inlined_call_operand.vmem [shape: f32[3,128], index: 4, kind: input, shape index: {}]
  %s5 = inlined_call_operand.vmem [shape: f32[2,8,128], index: 5, kind: input, shape index: {}]
  %s6 = inlined_call_operand.vmem [shape: bf16[2,32,96], index: 6, kind: input, shape index: {}]
  %s7 = inlined_call_operand.vmem [shape: bf16[2,32,32], index: 7, kind: input, shape index: {}]
  %s8 = inlined_call_operand.vmem [shape: bf16[2,32,64], index: 8, kind: input, shape index: {}]
  %s9 = inlined_call_operand.vmem [shape: bf16[2,64,32], index: 9, kind: input, shape index: {}]
  %s10 = inlined_call_operand.vmem [shape: bf16[32,128], index: 10, kind: input, shape index: {}]
  %s11 = inlined_call_operand.hbm [shape: f32[16,128], index: 11, kind: output, shape index: {}]
  %s12 = sld [smem:[#allocation0]]
  $region54: #{tpu_custom_call.1} parent=0
    _
  %s14 = ssub.s32 1, %s12
  %s15 = scalar_select 0, %s14, %s12
  $region1: #{tpu_custom_call.1} parent=0
    #allocation3 [shape = 'u8[8192]{0}', space=vmem, size = 0x2000, scoped, tag = 'output window, operand 0, single buffered']
    #allocation4 [shape = 's32[1]{0}', space=sflag, size = 0x4, scoped, tag = 'scoped memory for tpu_custom_call.1']
    %16 = vsyncpa [#allocation4], 0
    // Predicated region
    $region2: #{tpu_custom_call.1} parent=1 // pred_check
      _
    $region3: #{tpu_custom_call.1} parent=1 // pred_check_branch
      %18 = sbr.rel (0) target = $region5
    $region4: #{tpu_custom_call.1} parent=1 // pred_region
      _
    $region5: #{tpu_custom_call.1} parent=1 // pred_fallthru
      _
    // Predicated region
    $region6: #{tpu_custom_call.1} parent=1 // pred_check
      _
    $region7: #{tpu_custom_call.1} parent=1 // pred_check_branch
      %20 = sbr.rel (0) target = $region9
    $region8: #{tpu_custom_call.1} parent=1 // pred_region
      _
    $region9: #{tpu_custom_call.1} parent=1 // pred_fallthru
      _
    // Predicated region
    $region10: #{tpu_custom_call.1} parent=1 // pred_check
      _
    $region11: #{tpu_custom_call.1} parent=1 // pred_check_branch
      %22 = sbr.rel (0) target = $region13
    $region12: #{tpu_custom_call.1} parent=1 // pred_region
      _
    $region13: #{tpu_custom_call.1} parent=1 // pred_fallthru
      _
    // Predicated region
    $region14: #{tpu_custom_call.1} parent=1 // pred_check
      _
    $region15: #{tpu_custom_call.1} parent=1 // pred_check_branch
      %24 = sbr.rel (0) target = $region17
    $region16: #{tpu_custom_call.1} parent=1 // pred_region
      _
    $region17: #{tpu_custom_call.1} parent=1 // pred_fallthru
      _
    // Predicated region
    $region18: #{tpu_custom_call.1} parent=1 // pred_check
      _
    $region19: #{tpu_custom_call.1} parent=1 // pred_check_branch
      %26 = sbr.rel (0) target = $region21
    $region20: #{tpu_custom_call.1} parent=1 // pred_region
      _
    $region21: #{tpu_custom_call.1} parent=1 // pred_fallthru
      _
    // Predicated region
    $region22: #{tpu_custom_call.1} parent=1 // pred_check
      _
    $region23: #{tpu_custom_call.1} parent=1 // pred_check_branch
      %28 = sbr.rel (0) target = $region25
    $region24: #{tpu_custom_call.1} parent=1 // pred_region
      _
    $region25: #{tpu_custom_call.1} parent=1 // pred_fallthru
      _
    // Predicated region
    $region26: #{tpu_custom_call.1} parent=1 // pred_check
      _
    $region27: #{tpu_custom_call.1} parent=1 // pred_check_branch
      %30 = sbr.rel (0) target = $region29
    $region28: #{tpu_custom_call.1} parent=1 // pred_region
      _
    $region29: #{tpu_custom_call.1} parent=1 // pred_fallthru
      _
    // Predicated region
    $region30: #{tpu_custom_call.1} parent=1 // pred_check
      _
    $region31: #{tpu_custom_call.1} parent=1 // pred_check_branch
      %32 = sbr.rel (0) target = $region33
    $region32: #{tpu_custom_call.1} parent=1 // pred_region
      _
    $region33: #{tpu_custom_call.1} parent=1 // pred_fallthru
      _
    // Predicated region
    $region34: #{tpu_custom_call.1} parent=1 // pred_check
      _
    $region35: #{tpu_custom_call.1} parent=1 // pred_check_branch
      %34 = sbr.rel (0) target = $region37
    $region36: #{tpu_custom_call.1} parent=1 // pred_region
      _
    $region37: #{tpu_custom_call.1} parent=1 // pred_fallthru
      _
    // Predicated region
    $region38: #{tpu_custom_call.1} parent=1 // pred_check
      _
    $region39: #{tpu_custom_call.1} parent=1 // pred_check_branch
      %36 = sbr.rel (0) target = $region41
    $region40: #{tpu_custom_call.1} parent=1 // pred_region
      _
    $region41: #{tpu_custom_call.1} parent=1 // pred_fallthru
      _
    // Predicated region
    $region42: #{tpu_custom_call.1} parent=1 // pred_check
      _
    $region43: #{tpu_custom_call.1} parent=1 // pred_check_branch
      %38 = sbr.rel (0) target = $region45
    $region44: #{tpu_custom_call.1} parent=1 // pred_region
      _
    $region45: #{tpu_custom_call.1} parent=1 // pred_fallthru
      _
    %v40 = vld [vmem:[%s0] sm:$0xff]
    %v41 = vld [vmem:[%s0 + $0x8] sm:$0xff]
    %v42 = vlaneseq
    %v43 = vand.u32 %v42, 127
    %44 = vset.pattern.permute.xlu0 0
    %45 = vperm.xlu0 %44, %v40
    %v46 = vpop.permute.xlu0 %45
    %47 = vset.pattern.permute.xlu0 0
    %48 = vperm.xlu0 %47, %v41
    %v49 = vpop.permute.xlu0 %48
    %vm50 = vcmp.eq.s32.totalorder %v43, %v46
    %vm51 = vcmp.eq.s32.totalorder %v43, %v49
    %v52 = vsel %vm50, 1, 0
    %v53 = vsel %vm51, 1, 0
    %v54 = vcvt.s32.f32 %v52
    %v55 = vcvt.s32.f32 %v53
    %v56 = vpack.c.bf16 %v55, %v54
    %v57 = vld [vmem:[%s2] sm:$0xf]
    %v58 = vld [vmem:[%s2 + $0x4] sm:$0xf]
    %v59 = vld [vmem:[%s2 + $0x8] sm:$0xf]
    %v60 = vld [vmem:[%s2 + $0xc] sm:$0xf]
    %v61 = vld [vmem:[%s2 + $0x10] sm:$0xf]
    %v62 = vld [vmem:[%s2 + $0x14] sm:$0xf]
    %v63 = vld [vmem:[%s2 + $0x18] sm:$0xf]
    %v64 = vld [vmem:[%s2 + $0x1c] sm:$0xf]
    %v65 = vld [vmem:[%s2 + $0x20] sm:$0xf]
    %v66 = vld [vmem:[%s2 + $0x24] sm:$0xf]
    %v67 = vld [vmem:[%s2 + $0x28] sm:$0xf]
    %v68 = vld [vmem:[%s2 + $0x2c] sm:$0xf]
    %v69 = vld [vmem:[%s2 + $0x30] sm:$0xf]
    %v70 = vld [vmem:[%s2 + $0x34] sm:$0xf]
    %v71 = vld [vmem:[%s2 + $0x38] sm:$0xf]
    %v72 = vld [vmem:[%s2 + $0x3c] sm:$0xf]
    %v73 = vld [vmem:[%s3] sm:$0xff]
    %v74 = vld [vmem:[%s3 + $0x8] sm:$0xff]
    %vm75 = vcmp.eq.s32.totalorder %v40, 0
    %vm76 = vcmp.eq.s32.totalorder %v41, 0
    %v77 = vsel %vm75, 1, 0
    %v78 = vsel %vm76, 1, 0
    %v79 = vcvt.s32.f32 %v77
    %v80 = vcvt.s32.f32 %v78
    %v81 = vld [vmem:[%s3 + $0x10] sm:$0x1]
    %83 = vset.pattern.permute.xlu0 1
    %84 = vperm.xlu0 %83, %v79
    %v85 = vpop.permute.xlu0 %84
    %88 = vset.pattern.permute.xlu0 1
    %89 = vperm.xlu0 %88, %v80
    %v90 = vpop.permute.xlu0 %89
    %v92 = vlaneseq
    %v93 = vshrl.u32 %v92, 7
    %v94 = vsub.s32 0, %v93
    %v95 = vrot.slane %v81, %v94
    %v96 = vmul.f32 %v85, %v95
    %v97 = vmul.f32 %v90, %v95
    %v98 = vadd.f32 %v96, 0.0
    %v99 = vadd.f32 %v97, 0.0
    %vm100 = vcmp.eq.s32.totalorder %v40, 1
    %vm101 = vcmp.eq.s32.totalorder %v41, 1
    %v102 = vsel %vm100, 1, 0
    %v103 = vsel %vm101, 1, 0
    %v104 = vcvt.s32.f32 %v102
    %v105 = vcvt.s32.f32 %v103
    %v106 = vld [vmem:[%s3 + $0x11] sm:$0x1]
    %108 = vset.pattern.permute.xlu0 1
    %109 = vperm.xlu0 %108, %v104
    %v110 = vpop.permute.xlu0 %109
    %113 = vset.pattern.permute.xlu0 1
    %114 = vperm.xlu0 %113, %v105
    %v115 = vpop.permute.xlu0 %114
    %v117 = vlaneseq
    %v118 = vshrl.u32 %v117, 7
    %v119 = vsub.s32 0, %v118
    %v120 = vrot.slane %v106, %v119
    %v121 = vmul.f32 %v110, %v120
    %v122 = vmul.f32 %v115, %v120
    %v123 = vadd.f32 %v98, %v121
    %v124 = vadd.f32 %v99, %v122
    %v141 = vunpack.c.l.b16 %v57
    %v142 = vunpack.c.l.b16 %v58
    %v143 = vunpack.c.l.b16 %v59
    %v144 = vunpack.c.l.b16 %v60
    %v145 = vunpack.c.l.b16 %v61
    %v146 = vunpack.c.l.b16 %v62
    %v147 = vunpack.c.l.b16 %v63
    %v148 = vunpack.c.l.b16 %v64
    %v149 = vunpack.c.l.b16 %v65
    %v150 = vunpack.c.l.b16 %v66
    %v151 = vunpack.c.l.b16 %v67
    %v152 = vunpack.c.l.b16 %v68
    %v153 = vunpack.c.l.b16 %v69
    %v154 = vunpack.c.l.b16 %v70
    %v155 = vunpack.c.l.b16 %v71
    %v156 = vunpack.c.l.b16 %v72
    %v157 = vpack.c.b16 %v142, %v141
    %v158 = vpack.c.b16 %v144, %v143
    %v159 = vpack.c.b16 %v146, %v145
    %v160 = vpack.c.b16 %v148, %v147
    %v161 = vpack.c.b16 %v150, %v149
    %v162 = vpack.c.b16 %v152, %v151
    %v163 = vpack.c.b16 %v154, %v153
    %v164 = vpack.c.b16 %v156, %v155
    %173 = vmatprep.subr.bf16.mxu0 0
    %174 = vmatpush1.bf16.msra.mxu0 %v157
    %175 = vmatprep.subr.bf16.mxu0 0
    %176 = vmatpush1.bf16.msra.mxu0 %v158
    %177 = vmatprep.subr.bf16.mxu0 0
    %178 = vmatpush1.bf16.msra.mxu0 %v159
    %179 = vmatprep.subr.bf16.mxu0 0
    %180 = vmatpush1.bf16.msra.mxu0 %v160
    %181 = vmatprep.subr.bf16.mxu0 0
    %182 = vmatpush1.bf16.msra.mxu0 %v161
    %183 = vmatprep.subr.bf16.mxu0 0
    %184 = vmatpush1.bf16.msra.mxu0 %v162
    %185 = vmatprep.subr.bf16.mxu0 0
    %186 = vmatpush1.bf16.msra.mxu0 %v163
    %187 = vmatprep.subr.bf16.mxu0 0
    %188 = vmatpush1.bf16.msra.mxu0 %v164
    %189 = vmatprep.subr.bf16.mxu0 0
    %190 = vmatpush1.bf16.msra.mxu0 0
    %191 = vmatprep.subr.bf16.mxu0 0
    %192 = vmatpush1.bf16.msra.mxu0 0
    %193 = vmatprep.subr.bf16.mxu0 0
    %194 = vmatpush1.bf16.msra.mxu0 0
    %195 = vmatprep.subr.bf16.mxu0 0
    %196 = vmatpush1.bf16.msra.mxu0 0
    %197 = vmatprep.subr.bf16.mxu0 0
    %198 = vmatpush1.bf16.msra.mxu0 0
    %199 = vmatprep.subr.bf16.mxu0 0
    %200 = vmatpush1.bf16.msra.mxu0 0
    %201 = vmatprep.subr.bf16.mxu0 0
    %202 = vmatpush1.bf16.msra.mxu0 0
    %203 = vmatprep.subr.bf16.mxu0 0
    %204 = vmatpush1.bf16.msra.mxu0 0
    %205 = vmatprep.mubr.bf16.mxu0 0
    %206 = vmatmul.mubr.bf16.gmra.mrb[0].mxu0 %v56
    %v207 = vpop.f32.mrb[0].mxu0
    %v208 = vadd.f32 %v73, %v207
    %v209 = vpop.f32.mrb[0].mxu0
    %v210 = vpop.f32.mrb[0].mxu0
    %v211 = vadd.f32 %v74, %v210
    %v212 = vpop.f32.mrb[0].mxu0
    %213 = vdwg.mxu0
    %v214 = vadd.f32 %v208, %v123
    %v215 = vadd.f32 %v211, %v124
    %v216 = vld [vmem:[%s4] sm:$0x1]
    %v217 = vld [vmem:[%s4 + $0x1] sm:$0x1]
    %vm218 = vcmask 261120
    %v219 = vsel %vm218, %v214, 0.0
    %220 = vadd.xlane.f32.xlu0 %v219
    %v221 = vpop.xlane.xlu0 %220
    %v222 = vsel %vm218, %v215, 0.0
    %223 = vadd.xlane.f32.xlu0 %v222
    %v224 = vpop.xlane.xlu0 %223
    %v225 = vrcp.pop 32.0
    %v226 = vmul.f32 %v221, %v225
    %v227 = vmul.f32 %v224, %v225
    %v228 = vsub.f32 %v214, %v226
    %v229 = vsub.f32 %v215, %v227
    %v230 = vmul.f32 %v228, %v228
    %v231 = vmul.f32 %v229, %v229
    %v232 = vsel %vm218, %v230, 0.0
    %233 = vadd.xlane.f32.xlu0 %v232
    %v234 = vpop.xlane.xlu0 %233
    %v235 = vsel %vm218, %v231, 0.0
    %236 = vadd.xlane.f32.xlu0 %v235
    %v237 = vpop.xlane.xlu0 %236
    %v238 = vmul.f32 %v234, %v225
    %v239 = vmul.f32 %v237, %v225
    %v240 = vadd.f32 %v238, 1e-12
    %v241 = vadd.f32 %v239, 1e-12
    %v242 = vrsqrt.pop %v240
    %v243 = vrsqrt.pop %v241
    %v244 = vmul.f32 %v228, %v242
    %v245 = vmul.f32 %v229, %v243
    %v246 = vlaneseq
    %v247 = vshrl.u32 %v246, 7
    %v248 = vsub.s32 0, %v247
    %v249 = vrot.slane %v216, %v248
    %v250 = vmul.f32 %v244, %v249
    %v251 = vmul.f32 %v245, %v249
    %v252 = vlaneseq
    %v253 = vshrl.u32 %v252, 7
    %v254 = vsub.s32 0, %v253
    %v255 = vrot.slane %v217, %v254
    %v256 = vadd.f32 %v250, %v255
    %v257 = vadd.f32 %v251, %v255
    %v258 = vld [vmem:[%s1] sm:$0x1]
    %v259 = vsub.f32 1.0, %v258
    %v260 = vmul.f32 %v259, -10000.0
    %v261 = vlaneseq
    %v262 = vshrl.u32 %v261, 7
    %v263 = vadd.s32 %v262, 8
    %v264 = vshra.s32 %v262, 3
    %v265 = vshra.s32 %v263, 3
    %v266 = vshra.s32 %v43, 3
    %vm267 = vcmp.eq.s32.totalorder %v264, %v266
    %vm268 = vcmp.eq.s32.totalorder %v265, %v266
    %v270 = vlaneseq
    %v271 = vshrl.u32 %v270, 7
    %v272 = vsub.s32 0, %v271
    %v273 = vrot.slane %v260, %v272
    %v275 = vsel %vm267, %v273, -1e+09
    %v276 = vsel %vm268, %v273, -1e+09
    %v277 = vld [vmem:[%s6] sm:$0xf]
    %v278 = vld [vmem:[%s6 + $0x4] sm:$0xf]
    %v279 = vld [vmem:[%s6 + $0x8] sm:$0xf]
    %v280 = vld [vmem:[%s6 + $0xc] sm:$0xf]
    %v281 = vpack.c.bf16 %v257, %v256
    %v282 = vld [vmem:[%s5] sm:$0x1]
    %v283 = vlaneseq
    %v284 = vshrl.u32 %v283, 7
    %v285 = vsub.s32 0, %v284
    %v286 = vrot.slane %v282, %v285
    %v291 = vunpack.c.l.b16 %v277
    %v292 = vunpack.c.l.b16 %v278
    %v293 = vunpack.c.l.b16 %v279
    %v294 = vunpack.c.l.b16 %v280
    %v295 = vpack.c.b16 %v292, %v291
    %v296 = vpack.c.b16 %v294, %v293
    %v300 = vsel %vm218, %v281, 0
    %302 = vmatprep.subr.bf16.mxu0 0
    %303 = vmatpush1.bf16.msra.mxu0 %v295
    %304 = vmatprep.subr.bf16.mxu0 0
    %305 = vmatpush1.bf16.msra.mxu0 %v296
    %306 = vmatprep.subr.bf16.mxu0 0
    %307 = vmatpush1.bf16.msra.mxu0 0
    %308 = vmatprep.subr.bf16.mxu0 0
    %309 = vmatpush1.bf16.msra.mxu0 0
    %310 = vmatprep.subr.bf16.mxu0 0
    %311 = vmatpush1.bf16.msra.mxu0 0
    %312 = vmatprep.subr.bf16.mxu0 0
    %313 = vmatpush1.bf16.msra.mxu0 0
    %314 = vmatprep.subr.bf16.mxu0 0
    %315 = vmatpush1.bf16.msra.mxu0 0
    %316 = vmatprep.subr.bf16.mxu0 0
    %317 = vmatpush1.bf16.msra.mxu0 0
    %318 = vmatprep.subr.bf16.mxu0 0
    %319 = vmatpush1.bf16.msra.mxu0 0
    %320 = vmatprep.subr.bf16.mxu0 0
    %321 = vmatpush1.bf16.msra.mxu0 0
    %322 = vmatprep.subr.bf16.mxu0 0
    %323 = vmatpush1.bf16.msra.mxu0 0
    %324 = vmatprep.subr.bf16.mxu0 0
    %325 = vmatpush1.bf16.msra.mxu0 0
    %326 = vmatprep.subr.bf16.mxu0 0
    %327 = vmatpush1.bf16.msra.mxu0 0
    %328 = vmatprep.subr.bf16.mxu0 0
    %329 = vmatpush1.bf16.msra.mxu0 0
    %330 = vmatprep.subr.bf16.mxu0 0
    %331 = vmatpush1.bf16.msra.mxu0 0
    %332 = vmatprep.subr.bf16.mxu0 0
    %333 = vmatpush1.bf16.msra.mxu0 0
    %334 = vmatprep.mubr.bf16.mxu0 0
    %335 = vmatmul.mubr.bf16.gmra.mrb[0].mxu0 %v300
    %v336 = vpop.f32.mrb[0].mxu0
    %v337 = vadd.f32 %v286, %v336
    %v338 = vpop.f32.mrb[0].mxu0
    %v339 = vpop.f32.mrb[0].mxu0
    %v340 = vadd.f32 %v286, %v339
    %v341 = vpop.f32.mrb[0].mxu0
    %342 = vdwg.mxu0
    %v343 = vpack.c.bf16 %v340, %v337
    %345 = vrot.lane.b32.xlu0 %v343, 96
    %v346 = vpop.permute.xlu0 %345
    %vm347 = vcmask 130048
    %v349 = vsel %vm347, %v343, 0
    %v352 = vsel %vm347, %v346, 0
    %354 = vmatprep.subr.bf16.mxu0 0
    %355 = vmatpush1.bf16.xpose.msra.mxu0 %v352
    %356 = vmatprep.subr.bf16.mxu0 0
    %357 = vmatpush1.bf16.xpose.msra.mxu0 0
    %358 = vmatprep.subr.bf16.mxu0 0
    %359 = vmatpush1.bf16.xpose.msra.mxu0 0
    %360 = vmatprep.subr.bf16.mxu0 0
    %361 = vmatpush1.bf16.xpose.msra.mxu0 0
    %362 = vmatprep.subr.bf16.mxu0 0
    %363 = vmatpush1.bf16.xpose.msra.mxu0 0
    %364 = vmatprep.subr.bf16.mxu0 0
    %365 = vmatpush1.bf16.xpose.msra.mxu0 0
    %366 = vmatprep.subr.bf16.mxu0 0
    %367 = vmatpush1.bf16.xpose.msra.mxu0 0
    %368 = vmatprep.subr.bf16.mxu0 0
    %369 = vmatpush1.bf16.xpose.msra.mxu0 0
    %370 = vmatprep.subr.bf16.mxu0 0
    %371 = vmatpush1.bf16.xpose.msra.mxu0 0
    %372 = vmatprep.subr.bf16.mxu0 0
    %373 = vmatpush1.bf16.xpose.msra.mxu0 0
    %374 = vmatprep.subr.bf16.mxu0 0
    %375 = vmatpush1.bf16.xpose.msra.mxu0 0
    %376 = vmatprep.subr.bf16.mxu0 0
    %377 = vmatpush1.bf16.xpose.msra.mxu0 0
    %378 = vmatprep.subr.bf16.mxu0 0
    %379 = vmatpush1.bf16.xpose.msra.mxu0 0
    %380 = vmatprep.subr.bf16.mxu0 0
    %381 = vmatpush1.bf16.xpose.msra.mxu0 0
    %382 = vmatprep.subr.bf16.mxu0 0
    %383 = vmatpush1.bf16.xpose.msra.mxu0 0
    %384 = vmatprep.subr.bf16.mxu0 0
    %385 = vmatpush1.bf16.xpose.msra.mxu0 0
    %386 = vmatprep.mubr.bf16.mxu0 0
    %387 = vmatmul.mubr.bf16.gmra.mrb[0].mxu0 %v349
    %v388 = vpop.f32.mrb[0].mxu0
    %v389 = vadd.f32 0.0, %v388
    %v390 = vpop.f32.mrb[0].mxu0
    %v391 = vpop.f32.mrb[0].mxu0
    %v392 = vadd.f32 0.0, %v391
    %v393 = vpop.f32.mrb[0].mxu0
    %394 = vdwg.mxu0
    %v395 = vmul.f32 %v389, 0.25
    %v396 = vmul.f32 %v392, 0.25
    %v397 = vadd.f32 %v395, %v275
    %v398 = vadd.f32 %v396, %v276
    %v399 = vsel %vm347, %v397, -inf
    %400 = vmax.xlane.f32.xlu0 %v399
    %v401 = vpop.xlane.xlu0 %400
    %v402 = vsel %vm347, %v398, -inf
    %403 = vmax.xlane.f32.xlu0 %v402
    %v404 = vpop.xlane.xlu0 %403
    %v405 = vsub.f32 %v397, %v401
    %v406 = vsub.f32 %v398, %v404
    %v407 = vmul.f32 %v405, 1.442695
    %v408 = vpow.pop %v407
    %v409 = vmul.f32 %v406, 1.442695
    %v410 = vpow.pop %v409
    %v411 = vsel %vm347, %v408, 0.0
    %412 = vadd.xlane.f32.xlu0 %v411
    %v413 = vpop.xlane.xlu0 %412
    %v414 = vsel %vm347, %v410, 0.0
    %415 = vadd.xlane.f32.xlu0 %v414
    %v416 = vpop.xlane.xlu0 %415
    %v417 = vrcp.pop %v413
    %v418 = vrcp.pop %v416
    %v419 = vmul.f32 %v408, %v417
    %v420 = vmul.f32 %v410, %v418
    %v421 = vpack.c.bf16 %v420, %v419
    %422 = vrot.lane.b32.xlu0 %v343, 64
    %v423 = vpop.permute.xlu0 %422
    %v426 = vsel %vm347, %v421, 0
    %428 = vmatprep.subr.bf16.mxu0 0
    %429 = vmatpush1.bf16.msra.mxu0 %v423
    %430 = vmatprep.subr.bf16.mxu0 0
    %431 = vmatpush1.bf16.msra.mxu0 0
    %432 = vmatprep.subr.bf16.mxu0 0
    %433 = vmatpush1.bf16.msra.mxu0 0
    %434 = vmatprep.subr.bf16.mxu0 0
    %435 = vmatpush1.bf16.msra.mxu0 0
    %436 = vmatprep.subr.bf16.mxu0 0
    %437 = vmatpush1.bf16.msra.mxu0 0
    %438 = vmatprep.subr.bf16.mxu0 0
    %439 = vmatpush1.bf16.msra.mxu0 0
    %440 = vmatprep.subr.bf16.mxu0 0
    %441 = vmatpush1.bf16.msra.mxu0 0
    %442 = vmatprep.subr.bf16.mxu0 0
    %443 = vmatpush1.bf16.msra.mxu0 0
    %444 = vmatprep.subr.bf16.mxu0 0
    %445 = vmatpush1.bf16.msra.mxu0 0
    %446 = vmatprep.subr.bf16.mxu0 0
    %447 = vmatpush1.bf16.msra.mxu0 0
    %448 = vmatprep.subr.bf16.mxu0 0
    %449 = vmatpush1.bf16.msra.mxu0 0
    %450 = vmatprep.subr.bf16.mxu0 0
    %451 = vmatpush1.bf16.msra.mxu0 0
    %452 = vmatprep.subr.bf16.mxu0 0
    %453 = vmatpush1.bf16.msra.mxu0 0
    %454 = vmatprep.subr.bf16.mxu0 0
    %455 = vmatpush1.bf16.msra.mxu0 0
    %456 = vmatprep.subr.bf16.mxu0 0
    %457 = vmatpush1.bf16.msra.mxu0 0
    %458 = vmatprep.subr.bf16.mxu0 0
    %459 = vmatpush1.bf16.msra.mxu0 0
    %460 = vmatprep.mubr.bf16.mxu0 0
    %461 = vmatmul.mubr.bf16.gmra.mrb[0].mxu0 %v426
    %v462 = vpop.f32.mrb[0].mxu0
    %v463 = vadd.f32 0.0, %v462
    %v464 = vpop.f32.mrb[0].mxu0
    %v465 = vpop.f32.mrb[0].mxu0
    %v466 = vadd.f32 0.0, %v465
    %v467 = vpop.f32.mrb[0].mxu0
    %468 = vdwg.mxu0
    %469 = vst.msk [vmem:[#allocation2] sm:$0xff] %vm347, %v463
    %470 = vst.msk [vmem:[#allocation2 + $0x8] sm:$0xff] %vm347, %v466
    %471 = vrot.lane.b32.xlu0 %v343, 112
    %v472 = vpop.permute.xlu0 %471
    %473 = vrot.lane.b32.xlu0 %v343, 80
    %v474 = vpop.permute.xlu0 %473
    %v476 = vsel %vm347, %v472, 0
    %v479 = vsel %vm347, %v474, 0
    %481 = vmatprep.subr.bf16.mxu0 0
    %482 = vmatpush1.bf16.xpose.msra.mxu0 %v479
    %483 = vmatprep.subr.bf16.mxu0 0
    %484 = vmatpush1.bf16.xpose.msra.mxu0 0
    %485 = vmatprep.subr.bf16.mxu0 0
    %486 = vmatpush1.bf16.xpose.msra.mxu0 0
    %487 = vmatprep.subr.bf16.mxu0 0
    %488 = vmatpush1.bf16.xpose.msra.mxu0 0
    %489 = vmatprep.subr.bf16.mxu0 0
    %490 = vmatpush1.bf16.xpose.msra.mxu0 0
    %491 = vmatprep.subr.bf16.mxu0 0
    %492 = vmatpush1.bf16.xpose.msra.mxu0 0
    %493 = vmatprep.subr.bf16.mxu0 0
    %494 = vmatpush1.bf16.xpose.msra.mxu0 0
    %495 = vmatprep.subr.bf16.mxu0 0
    %496 = vmatpush1.bf16.xpose.msra.mxu0 0
    %497 = vmatprep.subr.bf16.mxu0 0
    %498 = vmatpush1.bf16.xpose.msra.mxu0 0
    %499 = vmatprep.subr.bf16.mxu0 0
    %500 = vmatpush1.bf16.xpose.msra.mxu0 0
    %501 = vmatprep.subr.bf16.mxu0 0
    %502 = vmatpush1.bf16.xpose.msra.mxu0 0
    %503 = vmatprep.subr.bf16.mxu0 0
    %504 = vmatpush1.bf16.xpose.msra.mxu0 0
    %505 = vmatprep.subr.bf16.mxu0 0
    %506 = vmatpush1.bf16.xpose.msra.mxu0 0
    %507 = vmatprep.subr.bf16.mxu0 0
    %508 = vmatpush1.bf16.xpose.msra.mxu0 0
    %509 = vmatprep.subr.bf16.mxu0 0
    %510 = vmatpush1.bf16.xpose.msra.mxu0 0
    %511 = vmatprep.subr.bf16.mxu0 0
    %512 = vmatpush1.bf16.xpose.msra.mxu0 0
    %513 = vmatprep.mubr.bf16.mxu0 0
    %514 = vmatmul.mubr.bf16.gmra.mrb[0].mxu0 %v476
    %v515 = vpop.f32.mrb[0].mxu0
    %v516 = vadd.f32 0.0, %v515
    %v517 = vpop.f32.mrb[0].mxu0
    %v518 = vpop.f32.mrb[0].mxu0
    %v519 = vadd.f32 0.0, %v518
    %v520 = vpop.f32.mrb[0].mxu0
    %521 = vdwg.mxu0
    %v522 = vmul.f32 %v516, 0.25
    %v523 = vmul.f32 %v519, 0.25
    %v524 = vadd.f32 %v522, %v275
    %v525 = vadd.f32 %v523, %v276
    %v526 = vsel %vm347, %v524, -inf
    %527 = vmax.xlane.f32.xlu0 %v526
    %v528 = vpop.xlane.xlu0 %527
    %v529 = vsel %vm347, %v525, -inf
    %530 = vmax.xlane.f32.xlu0 %v529
    %v531 = vpop.xlane.xlu0 %530
    %v532 = vsub.f32 %v524, %v528
    %v533 = vsub.f32 %v525, %v531
    %v534 = vmul.f32 %v532, 1.442695
    %v535 = vpow.pop %v534
    %v536 = vmul.f32 %v533, 1.442695
    %v537 = vpow.pop %v536
    %v538 = vsel %vm347, %v535, 0.0
    %539 = vadd.xlane.f32.xlu0 %v538
    %v540 = vpop.xlane.xlu0 %539
    %v541 = vsel %vm347, %v537, 0.0
    %542 = vadd.xlane.f32.xlu0 %v541
    %v543 = vpop.xlane.xlu0 %542
    %v544 = vrcp.pop %v540
    %v545 = vrcp.pop %v543
    %v546 = vmul.f32 %v535, %v544
    %v547 = vmul.f32 %v537, %v545
    %v548 = vpack.c.bf16 %v547, %v546
    %549 = vrot.lane.b32.xlu0 %v343, 48
    %v550 = vpop.permute.xlu0 %549
    %v553 = vsel %vm347, %v548, 0
    %555 = vmatprep.subr.bf16.mxu0 0
    %556 = vmatpush1.bf16.msra.mxu0 %v550
    %557 = vmatprep.subr.bf16.mxu0 0
    %558 = vmatpush1.bf16.msra.mxu0 0
    %559 = vmatprep.subr.bf16.mxu0 0
    %560 = vmatpush1.bf16.msra.mxu0 0
    %561 = vmatprep.subr.bf16.mxu0 0
    %562 = vmatpush1.bf16.msra.mxu0 0
    %563 = vmatprep.subr.bf16.mxu0 0
    %564 = vmatpush1.bf16.msra.mxu0 0
    %565 = vmatprep.subr.bf16.mxu0 0
    %566 = vmatpush1.bf16.msra.mxu0 0
    %567 = vmatprep.subr.bf16.mxu0 0
    %568 = vmatpush1.bf16.msra.mxu0 0
    %569 = vmatprep.subr.bf16.mxu0 0
    %570 = vmatpush1.bf16.msra.mxu0 0
    %571 = vmatprep.subr.bf16.mxu0 0
    %572 = vmatpush1.bf16.msra.mxu0 0
    %573 = vmatprep.subr.bf16.mxu0 0
    %574 = vmatpush1.bf16.msra.mxu0 0
    %575 = vmatprep.subr.bf16.mxu0 0
    %576 = vmatpush1.bf16.msra.mxu0 0
    %577 = vmatprep.subr.bf16.mxu0 0
    %578 = vmatpush1.bf16.msra.mxu0 0
    %579 = vmatprep.subr.bf16.mxu0 0
    %580 = vmatpush1.bf16.msra.mxu0 0
    %581 = vmatprep.subr.bf16.mxu0 0
    %582 = vmatpush1.bf16.msra.mxu0 0
    %583 = vmatprep.subr.bf16.mxu0 0
    %584 = vmatpush1.bf16.msra.mxu0 0
    %585 = vmatprep.subr.bf16.mxu0 0
    %586 = vmatpush1.bf16.msra.mxu0 0
    %587 = vmatprep.mubr.bf16.mxu0 0
    %588 = vmatmul.mubr.bf16.gmra.mrb[0].mxu0 %v553
    %v589 = vpop.f32.mrb[0].mxu0
    %v590 = vadd.f32 0.0, %v589
    %v591 = vpop.f32.mrb[0].mxu0
    %v592 = vpop.f32.mrb[0].mxu0
    %v593 = vadd.f32 0.0, %v592
    %v594 = vpop.f32.mrb[0].mxu0
    %595 = vdwg.mxu0
    %598 = vrot.lane.b32.xlu0 %v590, 16
    %v599 = vpop.permute.xlu0 %598
    %600 = vrot.lane.b32.xlu0 %v593, 16
    %v601 = vpop.permute.xlu0 %600
    %vm604 = vcmask 261248
    %605 = vst.msk [vmem:[#allocation2] sm:$0xff] %vm604, %v599
    %606 = vst.msk [vmem:[#allocation2 + $0x8] sm:$0xff] %vm604, %v601
    %v607 = vld [vmem:[#allocation2] sm:$0xff]
    %v608 = vld [vmem:[#allocation2 + $0x8] sm:$0xff]
    %v609 = vld [vmem:[%s7] sm:$0xf]
    %v610 = vld [vmem:[%s7 + $0x4] sm:$0xf]
    %v611 = vld [vmem:[%s7 + $0x8] sm:$0xf]
    %v612 = vld [vmem:[%s7 + $0xc] sm:$0xf]
    %v613 = vpack.c.bf16 %v608, %v607
    %v614 = vld [vmem:[%s5 + $0x1] sm:$0x1]
    %v615 = vlaneseq
    %v616 = vshrl.u32 %v615, 7
    %v617 = vsub.s32 0, %v616
    %v618 = vrot.slane %v614, %v617
    %v623 = vunpack.c.l.b16 %v609
    %v624 = vunpack.c.l.b16 %v610
    %v625 = vunpack.c.l.b16 %v611
    %v626 = vunpack.c.l.b16 %v612
    %v627 = vpack.c.b16 %v624, %v623
    %v628 = vpack.c.b16 %v626, %v625
    %v632 = vsel %vm218, %v613, 0
    %634 = vmatprep.subr.bf16.mxu0 0
    %635 = vmatpush1.bf16.msra.mxu0 %v627
    %636 = vmatprep.subr.bf16.mxu0 0
    %637 = vmatpush1.bf16.msra.mxu0 %v628
    %638 = vmatprep.subr.bf16.mxu0 0
    %639 = vmatpush1.bf16.msra.mxu0 0
    %640 = vmatprep.subr.bf16.mxu0 0
    %641 = vmatpush1.bf16.msra.mxu0 0
    %642 = vmatprep.subr.bf16.mxu0 0
    %643 = vmatpush1.bf16.msra.mxu0 0
    %644 = vmatprep.subr.bf16.mxu0 0
    %645 = vmatpush1.bf16.msra.mxu0 0
    %646 = vmatprep.subr.bf16.mxu0 0
    %647 = vmatpush1.bf16.msra.mxu0 0
    %648 = vmatprep.subr.bf16.mxu0 0
    %649 = vmatpush1.bf16.msra.mxu0 0
    %650 = vmatprep.subr.bf16.mxu0 0
    %651 = vmatpush1.bf16.msra.mxu0 0
    %652 = vmatprep.subr.bf16.mxu0 0
    %653 = vmatpush1.bf16.msra.mxu0 0
    %654 = vmatprep.subr.bf16.mxu0 0
    %655 = vmatpush1.bf16.msra.mxu0 0
    %656 = vmatprep.subr.bf16.mxu0 0
    %657 = vmatpush1.bf16.msra.mxu0 0
    %658 = vmatprep.subr.bf16.mxu0 0
    %659 = vmatpush1.bf16.msra.mxu0 0
    %660 = vmatprep.subr.bf16.mxu0 0
    %661 = vmatpush1.bf16.msra.mxu0 0
    %662 = vmatprep.subr.bf16.mxu0 0
    %663 = vmatpush1.bf16.msra.mxu0 0
    %664 = vmatprep.subr.bf16.mxu0 0
    %665 = vmatpush1.bf16.msra.mxu0 0
    %666 = vmatprep.mubr.bf16.mxu0 0
    %667 = vmatmul.mubr.bf16.gmra.mrb[0].mxu0 %v632
    %v668 = vpop.f32.mrb[0].mxu0
    %v669 = vadd.f32 %v618, %v668
    %v670 = vpop.f32.mrb[0].mxu0
    %v671 = vpop.f32.mrb[0].mxu0
    %v672 = vadd.f32 %v618, %v671
    %v673 = vpop.f32.mrb[0].mxu0
    %674 = vdwg.mxu0
    %v675 = vadd.f32 %v669, %v256
    %v676 = vadd.f32 %v672, %v257
    %v677 = vld [vmem:[%s5 + $0x2] sm:$0x1]
    %v678 = vld [vmem:[%s5 + $0x3] sm:$0x1]
    %v679 = vsel %vm218, %v675, 0.0
    %680 = vadd.xlane.f32.xlu0 %v679
    %v681 = vpop.xlane.xlu0 %680
    %v682 = vsel %vm218, %v676, 0.0
    %683 = vadd.xlane.f32.xlu0 %v682
    %v684 = vpop.xlane.xlu0 %683
    %v685 = vmul.f32 %v681, %v225
    %v686 = vmul.f32 %v684, %v225
    %v687 = vsub.f32 %v675, %v685
    %v688 = vsub.f32 %v676, %v686
    %v689 = vmul.f32 %v687, %v687
    %v690 = vmul.f32 %v688, %v688
    %v691 = vsel %vm218, %v689, 0.0
    %692 = vadd.xlane.f32.xlu0 %v691
    %v693 = vpop.xlane.xlu0 %692
    %v694 = vsel %vm218, %v690, 0.0
    %695 = vadd.xlane.f32.xlu0 %v694
    %v696 = vpop.xlane.xlu0 %695
    %v697 = vmul.f32 %v693, %v225
    %v698 = vmul.f32 %v696, %v225
    %v699 = vadd.f32 %v697, 1e-12
    %v700 = vadd.f32 %v698, 1e-12
    %v701 = vrsqrt.pop %v699
    %v702 = vrsqrt.pop %v700
    %v703 = vmul.f32 %v687, %v701
    %v704 = vmul.f32 %v688, %v702
    %v705 = vlaneseq
    %v706 = vshrl.u32 %v705, 7
    %v707 = vsub.s32 0, %v706
    %v708 = vrot.slane %v677, %v707
    %v709 = vmul.f32 %v703, %v708
    %v710 = vmul.f32 %v704, %v708
    %v711 = vlaneseq
    %v712 = vshrl.u32 %v711, 7
    %v713 = vsub.s32 0, %v712
    %v714 = vrot.slane %v678, %v713
    %v715 = vadd.f32 %v709, %v714
    %v716 = vadd.f32 %v710, %v714
    %v717 = vld [vmem:[%s8] sm:$0xf]
    %v718 = vld [vmem:[%s8 + $0x4] sm:$0xf]
    %v719 = vld [vmem:[%s8 + $0x8] sm:$0xf]
    %v720 = vld [vmem:[%s8 + $0xc] sm:$0xf]
    %v721 = vpack.c.bf16 %v716, %v715
    %v722 = vld [vmem:[%s5 + $0x4] sm:$0x1]
    %v723 = vlaneseq
    %v724 = vshrl.u32 %v723, 7
    %v725 = vsub.s32 0, %v724
    %v726 = vrot.slane %v722, %v725
    %v731 = vunpack.c.l.b16 %v717
    %v732 = vunpack.c.l.b16 %v718
    %v733 = vunpack.c.l.b16 %v719
    %v734 = vunpack.c.l.b16 %v720
    %v735 = vpack.c.b16 %v732, %v731
    %v736 = vpack.c.b16 %v734, %v733
    %v740 = vsel %vm218, %v721, 0
    %742 = vmatprep.subr.bf16.mxu0 0
    %743 = vmatpush1.bf16.msra.mxu0 %v735
    %744 = vmatprep.subr.bf16.mxu0 0
    %745 = vmatpush1.bf16.msra.mxu0 %v736
    %746 = vmatprep.subr.bf16.mxu0 0
    %747 = vmatpush1.bf16.msra.mxu0 0
    %748 = vmatprep.subr.bf16.mxu0 0
    %749 = vmatpush1.bf16.msra.mxu0 0
    %750 = vmatprep.subr.bf16.mxu0 0
    %751 = vmatpush1.bf16.msra.mxu0 0
    %752 = vmatprep.subr.bf16.mxu0 0
    %753 = vmatpush1.bf16.msra.mxu0 0
    %754 = vmatprep.subr.bf16.mxu0 0
    %755 = vmatpush1.bf16.msra.mxu0 0
    %756 = vmatprep.subr.bf16.mxu0 0
    %757 = vmatpush1.bf16.msra.mxu0 0
    %758 = vmatprep.subr.bf16.mxu0 0
    %759 = vmatpush1.bf16.msra.mxu0 0
    %760 = vmatprep.subr.bf16.mxu0 0
    %761 = vmatpush1.bf16.msra.mxu0 0
    %762 = vmatprep.subr.bf16.mxu0 0
    %763 = vmatpush1.bf16.msra.mxu0 0
    %764 = vmatprep.subr.bf16.mxu0 0
    %765 = vmatpush1.bf16.msra.mxu0 0
    %766 = vmatprep.subr.bf16.mxu0 0
    %767 = vmatpush1.bf16.msra.mxu0 0
    %768 = vmatprep.subr.bf16.mxu0 0
    %769 = vmatpush1.bf16.msra.mxu0 0
    %770 = vmatprep.subr.bf16.mxu0 0
    %771 = vmatpush1.bf16.msra.mxu0 0
    %772 = vmatprep.subr.bf16.mxu0 0
    %773 = vmatpush1.bf16.msra.mxu0 0
    %774 = vmatprep.mubr.bf16.mxu0 0
    %775 = vmatmul.mubr.bf16.gmra.mrb[0].mxu0 %v740
    %v776 = vpop.f32.mrb[0].mxu0
    %v777 = vadd.f32 %v726, %v776
    %v778 = vpop.f32.mrb[0].mxu0
    %v779 = vpop.f32.mrb[0].mxu0
    %v780 = vadd.f32 %v726, %v779
    %v781 = vpop.f32.mrb[0].mxu0
    %782 = vdwg.mxu0
    %v783 = vmul.f32 %v777, %v777
    %v784 = vmul.f32 %v780, %v780
    %v785 = vmul.f32 %v777, %v783
    %v786 = vmul.f32 %v780, %v784
    %v787 = vmul.f32 %v785, 0.044715
    %v788 = vmul.f32 %v786, 0.044715
    %v789 = vadd.f32 %v777, %v787
    %v790 = vadd.f32 %v780, %v788
    %v791 = vmul.f32 %v789, 0.7978846
    %v792 = vmul.f32 %v790, 0.7978846
    %v793 = vtanh.pop %v791
    %v794 = vtanh.pop %v792
    %v795 = vadd.f32 %v793, 1.0
    %v796 = vadd.f32 %v794, 1.0
    %v797 = vmul.f32 %v795, 0.5
    %v798 = vmul.f32 %v796, 0.5
    %v799 = vmul.f32 %v777, %v797
    %v800 = vmul.f32 %v780, %v798
    %v801 = vld [vmem:[%s9] sm:$0xf]
    %v802 = vld [vmem:[%s9 + $0x4] sm:$0xf]
    %v803 = vld [vmem:[%s9 + $0x8] sm:$0xf]
    %v804 = vld [vmem:[%s9 + $0xc] sm:$0xf]
    %v805 = vld [vmem:[%s9 + $0x10] sm:$0xf]
    %v806 = vld [vmem:[%s9 + $0x14] sm:$0xf]
    %v807 = vld [vmem:[%s9 + $0x18] sm:$0xf]
    %v808 = vld [vmem:[%s9 + $0x1c] sm:$0xf]
    %v809 = vpack.c.bf16 %v800, %v799
    %v810 = vld [vmem:[%s5 + $0x5] sm:$0x1]
    %v811 = vlaneseq
    %v812 = vshrl.u32 %v811, 7
    %v813 = vsub.s32 0, %v812
    %v814 = vrot.slane %v810, %v813
    %v823 = vunpack.c.l.b16 %v801
    %v824 = vunpack.c.l.b16 %v802
    %v825 = vunpack.c.l.b16 %v803
    %v826 = vunpack.c.l.b16 %v804
    %v827 = vunpack.c.l.b16 %v805
    %v828 = vunpack.c.l.b16 %v806
    %v829 = vunpack.c.l.b16 %v807
    %v830 = vunpack.c.l.b16 %v808
    %v831 = vpack.c.b16 %v824, %v823
    %v832 = vpack.c.b16 %v826, %v825
    %v833 = vpack.c.b16 %v828, %v827
    %v834 = vpack.c.b16 %v830, %v829
    %vm839 = vcmask 523264
    %v841 = vsel %vm839, %v809, 0
    %843 = vmatprep.subr.bf16.mxu0 0
    %844 = vmatpush1.bf16.msra.mxu0 %v831
    %845 = vmatprep.subr.bf16.mxu0 0
    %846 = vmatpush1.bf16.msra.mxu0 %v832
    %847 = vmatprep.subr.bf16.mxu0 0
    %848 = vmatpush1.bf16.msra.mxu0 %v833
    %849 = vmatprep.subr.bf16.mxu0 0
    %850 = vmatpush1.bf16.msra.mxu0 %v834
    %851 = vmatprep.subr.bf16.mxu0 0
    %852 = vmatpush1.bf16.msra.mxu0 0
    %853 = vmatprep.subr.bf16.mxu0 0
    %854 = vmatpush1.bf16.msra.mxu0 0
    %855 = vmatprep.subr.bf16.mxu0 0
    %856 = vmatpush1.bf16.msra.mxu0 0
    %857 = vmatprep.subr.bf16.mxu0 0
    %858 = vmatpush1.bf16.msra.mxu0 0
    %859 = vmatprep.subr.bf16.mxu0 0
    %860 = vmatpush1.bf16.msra.mxu0 0
    %861 = vmatprep.subr.bf16.mxu0 0
    %862 = vmatpush1.bf16.msra.mxu0 0
    %863 = vmatprep.subr.bf16.mxu0 0
    %864 = vmatpush1.bf16.msra.mxu0 0
    %865 = vmatprep.subr.bf16.mxu0 0
    %866 = vmatpush1.bf16.msra.mxu0 0
    %867 = vmatprep.subr.bf16.mxu0 0
    %868 = vmatpush1.bf16.msra.mxu0 0
    %869 = vmatprep.subr.bf16.mxu0 0
    %870 = vmatpush1.bf16.msra.mxu0 0
    %871 = vmatprep.subr.bf16.mxu0 0
    %872 = vmatpush1.bf16.msra.mxu0 0
    %873 = vmatprep.subr.bf16.mxu0 0
    %874 = vmatpush1.bf16.msra.mxu0 0
    %875 = vmatprep.mubr.bf16.mxu0 0
    %876 = vmatmul.mubr.bf16.gmra.mrb[0].mxu0 %v841
    %v877 = vpop.f32.mrb[0].mxu0
    %v878 = vadd.f32 %v814, %v877
    %v879 = vpop.f32.mrb[0].mxu0
    %v880 = vpop.f32.mrb[0].mxu0
    %v881 = vadd.f32 %v814, %v880
    %v882 = vpop.f32.mrb[0].mxu0
    %883 = vdwg.mxu0
    %v884 = vadd.f32 %v878, %v715
    %v885 = vadd.f32 %v881, %v716
    %v886 = vld [vmem:[%s5 + $0x6] sm:$0x1]
    %v887 = vld [vmem:[%s5 + $0x7] sm:$0x1]
    %v888 = vsel %vm218, %v884, 0.0
    %889 = vadd.xlane.f32.xlu0 %v888
    %v890 = vpop.xlane.xlu0 %889
    %v891 = vsel %vm218, %v885, 0.0
    %892 = vadd.xlane.f32.xlu0 %v891
    %v893 = vpop.xlane.xlu0 %892
    %v894 = vmul.f32 %v890, %v225
    %v895 = vmul.f32 %v893, %v225
    %v896 = vsub.f32 %v884, %v894
    %v897 = vsub.f32 %v885, %v895
    %v898 = vmul.f32 %v896, %v896
    %v899 = vmul.f32 %v897, %v897
    %v900 = vsel %vm218, %v898, 0.0
    %901 = vadd.xlane.f32.xlu0 %v900
    %v902 = vpop.xlane.xlu0 %901
    %v903 = vsel %vm218, %v899, 0.0
    %904 = vadd.xlane.f32.xlu0 %v903
    %v905 = vpop.xlane.xlu0 %904
    %v906 = vmul.f32 %v902, %v225
    %v907 = vmul.f32 %v905, %v225
    %v908 = vadd.f32 %v906, 1e-12
    %v909 = vadd.f32 %v907, 1e-12
    %v910 = vrsqrt.pop %v908
    %v911 = vrsqrt.pop %v909
    %v912 = vmul.f32 %v896, %v910
    %v913 = vmul.f32 %v897, %v911
    %v914 = vlaneseq
    %v915 = vshrl.u32 %v914, 7
    %v916 = vsub.s32 0, %v915
    %v917 = vrot.slane %v886, %v916
    %v918 = vmul.f32 %v912, %v917
    %v919 = vmul.f32 %v913, %v917
    %v920 = vlaneseq
    %v921 = vshrl.u32 %v920, 7
    %v922 = vsub.s32 0, %v921
    %v923 = vrot.slane %v887, %v922
    %v924 = vadd.f32 %v918, %v923
    %v925 = vadd.f32 %v919, %v923
    %s926 = scalar_lea.vmem %s6, 16
    %v927 = vld [vmem:[%s926] sm:$0xf]
    %v928 = vld [vmem:[%s926 + $0x4] sm:$0xf]
    %v929 = vld [vmem:[%s926 + $0x8] sm:$0xf]
    %v930 = vld [vmem:[%s926 + $0xc] sm:$0xf]
    %v931 = vpack.c.bf16 %v925, %v924
    %s932 = scalar_lea.vmem %s5, 8
    %v933 = vld [vmem:[%s932] sm:$0x1]
    %v934 = vlaneseq
    %v935 = vshrl.u32 %v934, 7
    %v936 = vsub.s32 0, %v935
    %v937 = vrot.slane %v933, %v936
    %v942 = vunpack.c.l.b16 %v927
    %v943 = vunpack.c.l.b16 %v928
    %v944 = vunpack.c.l.b16 %v929
    %v945 = vunpack.c.l.b16 %v930
    %v946 = vpack.c.b16 %v943, %v942
    %v947 = vpack.c.b16 %v945, %v944
    %v951 = vsel %vm218, %v931, 0
    %953 = vmatprep.subr.bf16.mxu0 0
    %954 = vmatpush1.bf16.msra.mxu0 %v946
    %955 = vmatprep.subr.bf16.mxu0 0
    %956 = vmatpush1.bf16.msra.mxu0 %v947
    %957 = vmatprep.subr.bf16.mxu0 0
    %958 = vmatpush1.bf16.msra.mxu0 0
    %959 = vmatprep.subr.bf16.mxu0 0
    %960 = vmatpush1.bf16.msra.mxu0 0
    %961 = vmatprep.subr.bf16.mxu0 0
    %962 = vmatpush1.bf16.msra.mxu0 0
    %963 = vmatprep.subr.bf16.mxu0 0
    %964 = vmatpush1.bf16.msra.mxu0 0
    %965 = vmatprep.subr.bf16.mxu0 0
    %966 = vmatpush1.bf16.msra.mxu0 0
    %967 = vmatprep.subr.bf16.mxu0 0
    %968 = vmatpush1.bf16.msra.mxu0 0
    %969 = vmatprep.subr.bf16.mxu0 0
    %970 = vmatpush1.bf16.msra.mxu0 0
    %971 = vmatprep.subr.bf16.mxu0 0
    %972 = vmatpush1.bf16.msra.mxu0 0
    %973 = vmatprep.subr.bf16.mxu0 0
    %974 = vmatpush1.bf16.msra.mxu0 0
    %975 = vmatprep.subr.bf16.mxu0 0
    %976 = vmatpush1.bf16.msra.mxu0 0
    %977 = vmatprep.subr.bf16.mxu0 0
    %978 = vmatpush1.bf16.msra.mxu0 0
    %979 = vmatprep.subr.bf16.mxu0 0
    %980 = vmatpush1.bf16.msra.mxu0 0
    %981 = vmatprep.subr.bf16.mxu0 0
    %982 = vmatpush1.bf16.msra.mxu0 0
    %983 = vmatprep.subr.bf16.mxu0 0
    %984 = vmatpush1.bf16.msra.mxu0 0
    %985 = vmatprep.mubr.bf16.mxu0 0
    %986 = vmatmul.mubr.bf16.gmra.mrb[0].mxu0 %v951
    %v987 = vpop.f32.mrb[0].mxu0
    %v988 = vadd.f32 %v937, %v987
    %v989 = vpop.f32.mrb[0].mxu0
    %v990 = vpop.f32.mrb[0].mxu0
    %v991 = vadd.f32 %v937, %v990
    %v992 = vpop.f32.mrb[0].mxu0
    %993 = vdwg.mxu0
    %v994 = vpack.c.bf16 %v991, %v988
    %996 = vrot.lane.b32.xlu0 %v994, 96
    %v997 = vpop.permute.xlu0 %996
    %v999 = vsel %vm347, %v994, 0
    %v1002 = vsel %vm347, %v997, 0
    %1004 = vmatprep.subr.bf16.mxu0 0
    %1005 = vmatpush1.bf16.xpose.msra.mxu0 %v1002
    %1006 = vmatprep.subr.bf16.mxu0 0
    %1007 = vmatpush1.bf16.xpose.msra.mxu0 0
    %1008 = vmatprep.subr.bf16.mxu0 0
    %1009 = vmatpush1.bf16.xpose.msra.mxu0 0
    %1010 = vmatprep.subr.bf16.mxu0 0
    %1011 = vmatpush1.bf16.xpose.msra.mxu0 0
    %1012 = vmatprep.subr.bf16.mxu0 0
    %1013 = vmatpush1.bf16.xpose.msra.mxu0 0
    %1014 = vmatprep.subr.bf16.mxu0 0
    %1015 = vmatpush1.bf16.xpose.msra.mxu0 0
    %1016 = vmatprep.subr.bf16.mxu0 0
    %1017 = vmatpush1.bf16.xpose.msra.mxu0 0
    %1018 = vmatprep.subr.bf16.mxu0 0
    %1019 = vmatpush1.bf16.xpose.msra.mxu0 0
    %1020 = vmatprep.subr.bf16.mxu0 0
    %1021 = vmatpush1.bf16.xpose.msra.mxu0 0
    %1022 = vmatprep.subr.bf16.mxu0 0
    %1023 = vmatpush1.bf16.xpose.msra.mxu0 0
    %1024 = vmatprep.subr.bf16.mxu0 0
    %1025 = vmatpush1.bf16.xpose.msra.mxu0 0
    %1026 = vmatprep.subr.bf16.mxu0 0
    %1027 = vmatpush1.bf16.xpose.msra.mxu0 0
    %1028 = vmatprep.subr.bf16.mxu0 0
    %1029 = vmatpush1.bf16.xpose.msra.mxu0 0
    %1030 = vmatprep.subr.bf16.mxu0 0
    %1031 = vmatpush1.bf16.xpose.msra.mxu0 0
    %1032 = vmatprep.subr.bf16.mxu0 0
    %1033 = vmatpush1.bf16.xpose.msra.mxu0 0
    %1034 = vmatprep.subr.bf16.mxu0 0
    %1035 = vmatpush1.bf16.xpose.msra.mxu0 0
    %1036 = vmatprep.mubr.bf16.mxu0 0
    %1037 = vmatmul.mubr.bf16.gmra.mrb[0].mxu0 %v999
    %v1038 = vpop.f32.mrb[0].mxu0
    %v1039 = vadd.f32 0.0, %v1038
    %v1040 = vpop.f32.mrb[0].mxu0
    %v1041 = vpop.f32.mrb[0].mxu0
    %v1042 = vadd.f32 0.0, %v1041
    %v1043 = vpop.f32.mrb[0].mxu0
    %1044 = vdwg.mxu0
    %v1045 = vmul.f32 %v1039, 0.25
    %v1046 = vmul.f32 %v1042, 0.25
    %v1047 = vadd.f32 %v1045, %v275
    %v1048 = vadd.f32 %v1046, %v276
    %v1049 = vsel %vm347, %v1047, -inf
    %1050 = vmax.xlane.f32.xlu0 %v1049
    %v1051 = vpop.xlane.xlu0 %1050
    %v1052 = vsel %vm347, %v1048, -inf
    %1053 = vmax.xlane.f32.xlu0 %v1052
    %v1054 = vpop.xlane.xlu0 %1053
    %v1055 = vsub.f32 %v1047, %v1051
    %v1056 = vsub.f32 %v1048, %v1054
    %v1057 = vmul.f32 %v1055, 1.442695
    %v1058 = vpow.pop %v1057
    %v1059 = vmul.f32 %v1056, 1.442695
    %v1060 = vpow.pop %v1059
    %v1061 = vsel %vm347, %v1058, 0.0
    %1062 = vadd.xlane.f32.xlu0 %v1061
    %v1063 = vpop.xlane.xlu0 %1062
    %v1064 = vsel %vm347, %v1060, 0.0
    %1065 = vadd.xlane.f32.xlu0 %v1064
    %v1066 = vpop.xlane.xlu0 %1065
    %v1067 = vrcp.pop %v1063
    %v1068 = vrcp.pop %v1066
    %v1069 = vmul.f32 %v1058, %v1067
    %v1070 = vmul.f32 %v1060, %v1068
    %v1071 = vpack.c.bf16 %v1070, %v1069
    %1072 = vrot.lane.b32.xlu0 %v994, 64
    %v1073 = vpop.permute.xlu0 %1072
    %v1076 = vsel %vm347, %v1071, 0
    %1078 = vmatprep.subr.bf16.mxu0 0
    %1079 = vmatpush1.bf16.msra.mxu0 %v1073
    %1080 = vmatprep.subr.bf16.mxu0 0
    %1081 = vmatpush1.bf16.msra.mxu0 0
    %1082 = vmatprep.subr.bf16.mxu0 0
    %1083 = vmatpush1.bf16.msra.mxu0 0
    %1084 = vmatprep.subr.bf16.mxu0 0
    %1085 = vmatpush1.bf16.msra.mxu0 0
    %1086 = vmatprep.subr.bf16.mxu0 0
    %1087 = vmatpush1.bf16.msra.mxu0 0
    %1088 = vmatprep.subr.bf16.mxu0 0
    %1089 = vmatpush1.bf16.msra.mxu0 0
    %1090 = vmatprep.subr.bf16.mxu0 0
    %1091 = vmatpush1.bf16.msra.mxu0 0
    %1092 = vmatprep.subr.bf16.mxu0 0
    %1093 = vmatpush1.bf16.msra.mxu0 0
    %1094 = vmatprep.subr.bf16.mxu0 0
    %1095 = vmatpush1.bf16.msra.mxu0 0
    %1096 = vmatprep.subr.bf16.mxu0 0
    %1097 = vmatpush1.bf16.msra.mxu0 0
    %1098 = vmatprep.subr.bf16.mxu0 0
    %1099 = vmatpush1.bf16.msra.mxu0 0
    %1100 = vmatprep.subr.bf16.mxu0 0
    %1101 = vmatpush1.bf16.msra.mxu0 0
    %1102 = vmatprep.subr.bf16.mxu0 0
    %1103 = vmatpush1.bf16.msra.mxu0 0
    %1104 = vmatprep.subr.bf16.mxu0 0
    %1105 = vmatpush1.bf16.msra.mxu0 0
    %1106 = vmatprep.subr.bf16.mxu0 0
    %1107 = vmatpush1.bf16.msra.mxu0 0
    %1108 = vmatprep.subr.bf16.mxu0 0
    %1109 = vmatpush1.bf16.msra.mxu0 0
    %1110 = vmatprep.mubr.bf16.mxu0 0
    %1111 = vmatmul.mubr.bf16.gmra.mrb[0].mxu0 %v1076
    %v1112 = vpop.f32.mrb[0].mxu0
    %v1113 = vadd.f32 0.0, %v1112
    %v1114 = vpop.f32.mrb[0].mxu0
    %v1115 = vpop.f32.mrb[0].mxu0
    %v1116 = vadd.f32 0.0, %v1115
    %v1117 = vpop.f32.mrb[0].mxu0
    %1118 = vdwg.mxu0
    %1119 = vst.msk [vmem:[#allocation2] sm:$0xff] %vm347, %v1113
    %1120 = vst.msk [vmem:[#allocation2 + $0x8] sm:$0xff] %vm347, %v1116
    %1121 = vrot.lane.b32.xlu0 %v994, 112
    %v1122 = vpop.permute.xlu0 %1121
    %1123 = vrot.lane.b32.xlu0 %v994, 80
    %v1124 = vpop.permute.xlu0 %1123
    %v1126 = vsel %vm347, %v1122, 0
    %v1129 = vsel %vm347, %v1124, 0
    %1131 = vmatprep.subr.bf16.mxu0 0
    %1132 = vmatpush1.bf16.xpose.msra.mxu0 %v1129
    %1133 = vmatprep.subr.bf16.mxu0 0
    %1134 = vmatpush1.bf16.xpose.msra.mxu0 0
    %1135 = vmatprep.subr.bf16.mxu0 0
    %1136 = vmatpush1.bf16.xpose.msra.mxu0 0
    %1137 = vmatprep.subr.bf16.mxu0 0
    %1138 = vmatpush1.bf16.xpose.msra.mxu0 0
    %1139 = vmatprep.subr.bf16.mxu0 0
    %1140 = vmatpush1.bf16.xpose.msra.mxu0 0
    %1141 = vmatprep.subr.bf16.mxu0 0
    %1142 = vmatpush1.bf16.xpose.msra.mxu0 0
    %1143 = vmatprep.subr.bf16.mxu0 0
    %1144 = vmatpush1.bf16.xpose.msra.mxu0 0
    %1145 = vmatprep.subr.bf16.mxu0 0
    %1146 = vmatpush1.bf16.xpose.msra.mxu0 0
    %1147 = vmatprep.subr.bf16.mxu0 0
    %1148 = vmatpush1.bf16.xpose.msra.mxu0 0
    %1149 = vmatprep.subr.bf16.mxu0 0
    %1150 = vmatpush1.bf16.xpose.msra.mxu0 0
    %1151 = vmatprep.subr.bf16.mxu0 0
    %1152 = vmatpush1.bf16.xpose.msra.mxu0 0
    %1153 = vmatprep.subr.bf16.mxu0 0
    %1154 = vmatpush1.bf16.xpose.msra.mxu0 0
    %1155 = vmatprep.subr.bf16.mxu0 0
    %1156 = vmatpush1.bf16.xpose.msra.mxu0 0
    %1157 = vmatprep.subr.bf16.mxu0 0
    %1158 = vmatpush1.bf16.xpose.msra.mxu0 0
    %1159 = vmatprep.subr.bf16.mxu0 0
    %1160 = vmatpush1.bf16.xpose.msra.mxu0 0
    %1161 = vmatprep.subr.bf16.mxu0 0
    %1162 = vmatpush1.bf16.xpose.msra.mxu0 0
    %1163 = vmatprep.mubr.bf16.mxu0 0
    %1164 = vmatmul.mubr.bf16.gmra.mrb[0].mxu0 %v1126
    %v1165 = vpop.f32.mrb[0].mxu0
    %v1166 = vadd.f32 0.0, %v1165
    %v1167 = vpop.f32.mrb[0].mxu0
    %v1168 = vpop.f32.mrb[0].mxu0
    %v1169 = vadd.f32 0.0, %v1168
    %v1170 = vpop.f32.mrb[0].mxu0
    %1171 = vdwg.mxu0
    %v1172 = vmul.f32 %v1166, 0.25
    %v1173 = vmul.f32 %v1169, 0.25
    %v1174 = vadd.f32 %v1172, %v275
    %v1175 = vadd.f32 %v1173, %v276
    %v1176 = vsel %vm347, %v1174, -inf
    %1177 = vmax.xlane.f32.xlu0 %v1176
    %v1178 = vpop.xlane.xlu0 %1177
    %v1179 = vsel %vm347, %v1175, -inf
    %1180 = vmax.xlane.f32.xlu0 %v1179
    %v1181 = vpop.xlane.xlu0 %1180
    %v1182 = vsub.f32 %v1174, %v1178
    %v1183 = vsub.f32 %v1175, %v1181
    %v1184 = vmul.f32 %v1182, 1.442695
    %v1185 = vpow.pop %v1184
    %v1186 = vmul.f32 %v1183, 1.442695
    %v1187 = vpow.pop %v1186
    %v1188 = vsel %vm347, %v1185, 0.0
    %1189 = vadd.xlane.f32.xlu0 %v1188
    %v1190 = vpop.xlane.xlu0 %1189
    %v1191 = vsel %vm347, %v1187, 0.0
    %1192 = vadd.xlane.f32.xlu0 %v1191
    %v1193 = vpop.xlane.xlu0 %1192
    %v1194 = vrcp.pop %v1190
    %v1195 = vrcp.pop %v1193
    %v1196 = vmul.f32 %v1185, %v1194
    %v1197 = vmul.f32 %v1187, %v1195
    %v1198 = vpack.c.bf16 %v1197, %v1196
    %1199 = vrot.lane.b32.xlu0 %v994, 48
    %v1200 = vpop.permute.xlu0 %1199
    %v1203 = vsel %vm347, %v1198, 0
    %1205 = vmatprep.subr.bf16.mxu0 0
    %1206 = vmatpush1.bf16.msra.mxu0 %v1200
    %1207 = vmatprep.subr.bf16.mxu0 0
    %1208 = vmatpush1.bf16.msra.mxu0 0
    %1209 = vmatprep.subr.bf16.mxu0 0
    %1210 = vmatpush1.bf16.msra.mxu0 0
    %1211 = vmatprep.subr.bf16.mxu0 0
    %1212 = vmatpush1.bf16.msra.mxu0 0
    %1213 = vmatprep.subr.bf16.mxu0 0
    %1214 = vmatpush1.bf16.msra.mxu0 0
    %1215 = vmatprep.subr.bf16.mxu0 0
    %1216 = vmatpush1.bf16.msra.mxu0 0
    %1217 = vmatprep.subr.bf16.mxu0 0
    %1218 = vmatpush1.bf16.msra.mxu0 0
    %1219 = vmatprep.subr.bf16.mxu0 0
    %1220 = vmatpush1.bf16.msra.mxu0 0
    %1221 = vmatprep.subr.bf16.mxu0 0
    %1222 = vmatpush1.bf16.msra.mxu0 0
    %1223 = vmatprep.subr.bf16.mxu0 0
    %1224 = vmatpush1.bf16.msra.mxu0 0
    %1225 = vmatprep.subr.bf16.mxu0 0
    %1226 = vmatpush1.bf16.msra.mxu0 0
    %1227 = vmatprep.subr.bf16.mxu0 0
    %1228 = vmatpush1.bf16.msra.mxu0 0
    %1229 = vmatprep.subr.bf16.mxu0 0
    %1230 = vmatpush1.bf16.msra.mxu0 0
    %1231 = vmatprep.subr.bf16.mxu0 0
    %1232 = vmatpush1.bf16.msra.mxu0 0
    %1233 = vmatprep.subr.bf16.mxu0 0
    %1234 = vmatpush1.bf16.msra.mxu0 0
    %1235 = vmatprep.subr.bf16.mxu0 0
    %1236 = vmatpush1.bf16.msra.mxu0 0
    %1237 = vmatprep.mubr.bf16.mxu0 0
    %1238 = vmatmul.mubr.bf16.gmra.mrb[0].mxu0 %v1203
    %v1239 = vpop.f32.mrb[0].mxu0
    %v1240 = vadd.f32 0.0, %v1239
    %v1241 = vpop.f32.mrb[0].mxu0
    %v1242 = vpop.f32.mrb[0].mxu0
    %v1243 = vadd.f32 0.0, %v1242
    %v1244 = vpop.f32.mrb[0].mxu0
    %1245 = vdwg.mxu0
    %1248 = vrot.lane.b32.xlu0 %v1240, 16
    %v1249 = vpop.permute.xlu0 %1248
    %1250 = vrot.lane.b32.xlu0 %v1243, 16
    %v1251 = vpop.permute.xlu0 %1250
    %1254 = vst.msk [vmem:[#allocation2] sm:$0xff] %vm604, %v1249
    %1255 = vst.msk [vmem:[#allocation2 + $0x8] sm:$0xff] %vm604, %v1251
    %v1256 = vld [vmem:[#allocation2] sm:$0xff]
    %v1257 = vld [vmem:[#allocation2 + $0x8] sm:$0xff]
    %s1258 = scalar_lea.vmem %s7, 16
    %v1259 = vld [vmem:[%s1258] sm:$0xf]
    %v1260 = vld [vmem:[%s1258 + $0x4] sm:$0xf]
    %v1261 = vld [vmem:[%s1258 + $0x8] sm:$0xf]
    %v1262 = vld [vmem:[%s1258 + $0xc] sm:$0xf]
    %v1263 = vpack.c.bf16 %v1257, %v1256
    %v1264 = vld [vmem:[%s932 + $0x1] sm:$0x1]
    %v1265 = vlaneseq
    %v1266 = vshrl.u32 %v1265, 7
    %v1267 = vsub.s32 0, %v1266
    %v1268 = vrot.slane %v1264, %v1267
    %v1273 = vunpack.c.l.b16 %v1259
    %v1274 = vunpack.c.l.b16 %v1260
    %v1275 = vunpack.c.l.b16 %v1261
    %v1276 = vunpack.c.l.b16 %v1262
    %v1277 = vpack.c.b16 %v1274, %v1273
    %v1278 = vpack.c.b16 %v1276, %v1275
    %v1282 = vsel %vm218, %v1263, 0
    %1284 = vmatprep.subr.bf16.mxu0 0
    %1285 = vmatpush1.bf16.msra.mxu0 %v1277
    %1286 = vmatprep.subr.bf16.mxu0 0
    %1287 = vmatpush1.bf16.msra.mxu0 %v1278
    %1288 = vmatprep.subr.bf16.mxu0 0
    %1289 = vmatpush1.bf16.msra.mxu0 0
    %1290 = vmatprep.subr.bf16.mxu0 0
    %1291 = vmatpush1.bf16.msra.mxu0 0
    %1292 = vmatprep.subr.bf16.mxu0 0
    %1293 = vmatpush1.bf16.msra.mxu0 0
    %1294 = vmatprep.subr.bf16.mxu0 0
    %1295 = vmatpush1.bf16.msra.mxu0 0
    %1296 = vmatprep.subr.bf16.mxu0 0
    %1297 = vmatpush1.bf16.msra.mxu0 0
    %1298 = vmatprep.subr.bf16.mxu0 0
    %1299 = vmatpush1.bf16.msra.mxu0 0
    %1300 = vmatprep.subr.bf16.mxu0 0
    %1301 = vmatpush1.bf16.msra.mxu0 0
    %1302 = vmatprep.subr.bf16.mxu0 0
    %1303 = vmatpush1.bf16.msra.mxu0 0
    %1304 = vmatprep.subr.bf16.mxu0 0
    %1305 = vmatpush1.bf16.msra.mxu0 0
    %1306 = vmatprep.subr.bf16.mxu0 0
    %1307 = vmatpush1.bf16.msra.mxu0 0
    %1308 = vmatprep.subr.bf16.mxu0 0
    %1309 = vmatpush1.bf16.msra.mxu0 0
    %1310 = vmatprep.subr.bf16.mxu0 0
    %1311 = vmatpush1.bf16.msra.mxu0 0
    %1312 = vmatprep.subr.bf16.mxu0 0
    %1313 = vmatpush1.bf16.msra.mxu0 0
    %1314 = vmatprep.subr.bf16.mxu0 0
    %1315 = vmatpush1.bf16.msra.mxu0 0
    %1316 = vmatprep.mubr.bf16.mxu0 0
    %1317 = vmatmul.mubr.bf16.gmra.mrb[0].mxu0 %v1282
    %v1318 = vpop.f32.mrb[0].mxu0
    %v1319 = vadd.f32 %v1268, %v1318
    %v1320 = vpop.f32.mrb[0].mxu0
    %v1321 = vpop.f32.mrb[0].mxu0
    %v1322 = vadd.f32 %v1268, %v1321
    %v1323 = vpop.f32.mrb[0].mxu0
    %1324 = vdwg.mxu0
    %v1325 = vadd.f32 %v1319, %v924
    %v1326 = vadd.f32 %v1322, %v925
    %v1327 = vld [vmem:[%s932 + $0x2] sm:$0x1]
    %v1328 = vld [vmem:[%s932 + $0x3] sm:$0x1]
    %v1329 = vsel %vm218, %v1325, 0.0
    %1330 = vadd.xlane.f32.xlu0 %v1329
    %v1331 = vpop.xlane.xlu0 %1330
    %v1332 = vsel %vm218, %v1326, 0.0
    %1333 = vadd.xlane.f32.xlu0 %v1332
    %v1334 = vpop.xlane.xlu0 %1333
    %v1335 = vmul.f32 %v1331, %v225
    %v1336 = vmul.f32 %v1334, %v225
    %v1337 = vsub.f32 %v1325, %v1335
    %v1338 = vsub.f32 %v1326, %v1336
    %v1339 = vmul.f32 %v1337, %v1337
    %v1340 = vmul.f32 %v1338, %v1338
    %v1341 = vsel %vm218, %v1339, 0.0
    %1342 = vadd.xlane.f32.xlu0 %v1341
    %v1343 = vpop.xlane.xlu0 %1342
    %v1344 = vsel %vm218, %v1340, 0.0
    %1345 = vadd.xlane.f32.xlu0 %v1344
    %v1346 = vpop.xlane.xlu0 %1345
    %v1347 = vmul.f32 %v1343, %v225
    %v1348 = vmul.f32 %v1346, %v225
    %v1349 = vadd.f32 %v1347, 1e-12
    %v1350 = vadd.f32 %v1348, 1e-12
    %v1351 = vrsqrt.pop %v1349
    %v1352 = vrsqrt.pop %v1350
    %v1353 = vmul.f32 %v1337, %v1351
    %v1354 = vmul.f32 %v1338, %v1352
    %v1355 = vlaneseq
    %v1356 = vshrl.u32 %v1355, 7
    %v1357 = vsub.s32 0, %v1356
    %v1358 = vrot.slane %v1327, %v1357
    %v1359 = vmul.f32 %v1353, %v1358
    %v1360 = vmul.f32 %v1354, %v1358
    %v1361 = vlaneseq
    %v1362 = vshrl.u32 %v1361, 7
    %v1363 = vsub.s32 0, %v1362
    %v1364 = vrot.slane %v1328, %v1363
    %v1365 = vadd.f32 %v1359, %v1364
    %v1366 = vadd.f32 %v1360, %v1364
    %s1367 = scalar_lea.vmem %s8, 16
    %v1368 = vld [vmem:[%s1367] sm:$0xf]
    %v1369 = vld [vmem:[%s1367 + $0x4] sm:$0xf]
    %v1370 = vld [vmem:[%s1367 + $0x8] sm:$0xf]
    %v1371 = vld [vmem:[%s1367 + $0xc] sm:$0xf]
    %v1372 = vpack.c.bf16 %v1366, %v1365
    %v1373 = vld [vmem:[%s932 + $0x4] sm:$0x1]
    %v1374 = vlaneseq
    %v1375 = vshrl.u32 %v1374, 7
    %v1376 = vsub.s32 0, %v1375
    %v1377 = vrot.slane %v1373, %v1376
    %v1382 = vunpack.c.l.b16 %v1368
    %v1383 = vunpack.c.l.b16 %v1369
    %v1384 = vunpack.c.l.b16 %v1370
    %v1385 = vunpack.c.l.b16 %v1371
    %v1386 = vpack.c.b16 %v1383, %v1382
    %v1387 = vpack.c.b16 %v1385, %v1384
    %v1391 = vsel %vm218, %v1372, 0
    %1393 = vmatprep.subr.bf16.mxu0 0
    %1394 = vmatpush1.bf16.msra.mxu0 %v1386
    %1395 = vmatprep.subr.bf16.mxu0 0
    %1396 = vmatpush1.bf16.msra.mxu0 %v1387
    %1397 = vmatprep.subr.bf16.mxu0 0
    %1398 = vmatpush1.bf16.msra.mxu0 0
    %1399 = vmatprep.subr.bf16.mxu0 0
    %1400 = vmatpush1.bf16.msra.mxu0 0
    %1401 = vmatprep.subr.bf16.mxu0 0
    %1402 = vmatpush1.bf16.msra.mxu0 0
    %1403 = vmatprep.subr.bf16.mxu0 0
    %1404 = vmatpush1.bf16.msra.mxu0 0
    %1405 = vmatprep.subr.bf16.mxu0 0
    %1406 = vmatpush1.bf16.msra.mxu0 0
    %1407 = vmatprep.subr.bf16.mxu0 0
    %1408 = vmatpush1.bf16.msra.mxu0 0
    %1409 = vmatprep.subr.bf16.mxu0 0
    %1410 = vmatpush1.bf16.msra.mxu0 0
    %1411 = vmatprep.subr.bf16.mxu0 0
    %1412 = vmatpush1.bf16.msra.mxu0 0
    %1413 = vmatprep.subr.bf16.mxu0 0
    %1414 = vmatpush1.bf16.msra.mxu0 0
    %1415 = vmatprep.subr.bf16.mxu0 0
    %1416 = vmatpush1.bf16.msra.mxu0 0
    %1417 = vmatprep.subr.bf16.mxu0 0
    %1418 = vmatpush1.bf16.msra.mxu0 0
    %1419 = vmatprep.subr.bf16.mxu0 0
    %1420 = vmatpush1.bf16.msra.mxu0 0
    %1421 = vmatprep.subr.bf16.mxu0 0
    %1422 = vmatpush1.bf16.msra.mxu0 0
    %1423 = vmatprep.subr.bf16.mxu0 0
    %1424 = vmatpush1.bf16.msra.mxu0 0
    %1425 = vmatprep.mubr.bf16.mxu0 0
    %1426 = vmatmul.mubr.bf16.gmra.mrb[0].mxu0 %v1391
    %v1427 = vpop.f32.mrb[0].mxu0
    %v1428 = vadd.f32 %v1377, %v1427
    %v1429 = vpop.f32.mrb[0].mxu0
    %v1430 = vpop.f32.mrb[0].mxu0
    %v1431 = vadd.f32 %v1377, %v1430
    %v1432 = vpop.f32.mrb[0].mxu0
    %1433 = vdwg.mxu0
    %v1434 = vmul.f32 %v1428, %v1428
    %v1435 = vmul.f32 %v1431, %v1431
    %v1436 = vmul.f32 %v1428, %v1434
    %v1437 = vmul.f32 %v1431, %v1435
    %v1438 = vmul.f32 %v1436, 0.044715
    %v1439 = vmul.f32 %v1437, 0.044715
    %v1440 = vadd.f32 %v1428, %v1438
    %v1441 = vadd.f32 %v1431, %v1439
    %v1442 = vmul.f32 %v1440, 0.7978846
    %v1443 = vmul.f32 %v1441, 0.7978846
    %v1444 = vtanh.pop %v1442
    %v1445 = vtanh.pop %v1443
    %v1446 = vadd.f32 %v1444, 1.0
    %v1447 = vadd.f32 %v1445, 1.0
    %v1448 = vmul.f32 %v1446, 0.5
    %v1449 = vmul.f32 %v1447, 0.5
    %v1450 = vmul.f32 %v1428, %v1448
    %v1451 = vmul.f32 %v1431, %v1449
    %s1452 = scalar_lea.vmem %s9, 32
    %v1453 = vld [vmem:[%s1452] sm:$0xf]
    %v1454 = vld [vmem:[%s1452 + $0x4] sm:$0xf]
    %v1455 = vld [vmem:[%s1452 + $0x8] sm:$0xf]
    %v1456 = vld [vmem:[%s1452 + $0xc] sm:$0xf]
    %v1457 = vld [vmem:[%s1452 + $0x10] sm:$0xf]
    %v1458 = vld [vmem:[%s1452 + $0x14] sm:$0xf]
    %v1459 = vld [vmem:[%s1452 + $0x18] sm:$0xf]
    %v1460 = vld [vmem:[%s1452 + $0x1c] sm:$0xf]
    %v1461 = vpack.c.bf16 %v1451, %v1450
    %v1462 = vld [vmem:[%s932 + $0x5] sm:$0x1]
    %v1463 = vlaneseq
    %v1464 = vshrl.u32 %v1463, 7
    %v1465 = vsub.s32 0, %v1464
    %v1466 = vrot.slane %v1462, %v1465
    %v1475 = vunpack.c.l.b16 %v1453
    %v1476 = vunpack.c.l.b16 %v1454
    %v1477 = vunpack.c.l.b16 %v1455
    %v1478 = vunpack.c.l.b16 %v1456
    %v1479 = vunpack.c.l.b16 %v1457
    %v1480 = vunpack.c.l.b16 %v1458
    %v1481 = vunpack.c.l.b16 %v1459
    %v1482 = vunpack.c.l.b16 %v1460
    %v1483 = vpack.c.b16 %v1476, %v1475
    %v1484 = vpack.c.b16 %v1478, %v1477
    %v1485 = vpack.c.b16 %v1480, %v1479
    %v1486 = vpack.c.b16 %v1482, %v1481
    %v1492 = vsel %vm839, %v1461, 0
    %1494 = vmatprep.subr.bf16.mxu0 0
    %1495 = vmatpush1.bf16.msra.mxu0 %v1483
    %1496 = vmatprep.subr.bf16.mxu0 0
    %1497 = vmatpush1.bf16.msra.mxu0 %v1484
    %1498 = vmatprep.subr.bf16.mxu0 0
    %1499 = vmatpush1.bf16.msra.mxu0 %v1485
    %1500 = vmatprep.subr.bf16.mxu0 0
    %1501 = vmatpush1.bf16.msra.mxu0 %v1486
    %1502 = vmatprep.subr.bf16.mxu0 0
    %1503 = vmatpush1.bf16.msra.mxu0 0
    %1504 = vmatprep.subr.bf16.mxu0 0
    %1505 = vmatpush1.bf16.msra.mxu0 0
    %1506 = vmatprep.subr.bf16.mxu0 0
    %1507 = vmatpush1.bf16.msra.mxu0 0
    %1508 = vmatprep.subr.bf16.mxu0 0
    %1509 = vmatpush1.bf16.msra.mxu0 0
    %1510 = vmatprep.subr.bf16.mxu0 0
    %1511 = vmatpush1.bf16.msra.mxu0 0
    %1512 = vmatprep.subr.bf16.mxu0 0
    %1513 = vmatpush1.bf16.msra.mxu0 0
    %1514 = vmatprep.subr.bf16.mxu0 0
    %1515 = vmatpush1.bf16.msra.mxu0 0
    %1516 = vmatprep.subr.bf16.mxu0 0
    %1517 = vmatpush1.bf16.msra.mxu0 0
    %1518 = vmatprep.subr.bf16.mxu0 0
    %1519 = vmatpush1.bf16.msra.mxu0 0
    %1520 = vmatprep.subr.bf16.mxu0 0
    %1521 = vmatpush1.bf16.msra.mxu0 0
    %1522 = vmatprep.subr.bf16.mxu0 0
    %1523 = vmatpush1.bf16.msra.mxu0 0
    %1524 = vmatprep.subr.bf16.mxu0 0
    %1525 = vmatpush1.bf16.msra.mxu0 0
    %1526 = vmatprep.mubr.bf16.mxu0 0
    %1527 = vmatmul.mubr.bf16.gmra.mrb[0].mxu0 %v1492
    %v1528 = vpop.f32.mrb[0].mxu0
    %v1529 = vadd.f32 %v1466, %v1528
    %v1530 = vpop.f32.mrb[0].mxu0
    %v1531 = vpop.f32.mrb[0].mxu0
    %v1532 = vadd.f32 %v1466, %v1531
    %v1533 = vpop.f32.mrb[0].mxu0
    %1534 = vdwg.mxu0
    %v1535 = vadd.f32 %v1529, %v1365
    %v1536 = vadd.f32 %v1532, %v1366
    %v1537 = vld [vmem:[%s932 + $0x6] sm:$0x1]
    %v1538 = vld [vmem:[%s932 + $0x7] sm:$0x1]
    %v1539 = vsel %vm218, %v1535, 0.0
    %1540 = vadd.xlane.f32.xlu0 %v1539
    %v1541 = vpop.xlane.xlu0 %1540
    %v1542 = vsel %vm218, %v1536, 0.0
    %1543 = vadd.xlane.f32.xlu0 %v1542
    %v1544 = vpop.xlane.xlu0 %1543
    %v1545 = vmul.f32 %v1541, %v225
    %v1546 = vmul.f32 %v1544, %v225
    %v1547 = vsub.f32 %v1535, %v1545
    %v1548 = vsub.f32 %v1536, %v1546
    %v1549 = vmul.f32 %v1547, %v1547
    %v1550 = vmul.f32 %v1548, %v1548
    %v1551 = vsel %vm218, %v1549, 0.0
    %1552 = vadd.xlane.f32.xlu0 %v1551
    %v1553 = vpop.xlane.xlu0 %1552
    %v1554 = vsel %vm218, %v1550, 0.0
    %1555 = vadd.xlane.f32.xlu0 %v1554
    %v1556 = vpop.xlane.xlu0 %1555
    %v1557 = vmul.f32 %v1553, %v225
    %v1558 = vmul.f32 %v1556, %v225
    %v1559 = vadd.f32 %v1557, 1e-12
    %v1560 = vadd.f32 %v1558, 1e-12
    %v1561 = vrsqrt.pop %v1559
    %v1562 = vrsqrt.pop %v1560
    %v1563 = vmul.f32 %v1547, %v1561
    %v1564 = vmul.f32 %v1548, %v1562
    %v1565 = vlaneseq
    %v1566 = vshrl.u32 %v1565, 7
    %v1567 = vsub.s32 0, %v1566
    %v1568 = vrot.slane %v1537, %v1567
    %v1569 = vmul.f32 %v1563, %v1568
    %v1570 = vmul.f32 %v1564, %v1568
    %v1571 = vlaneseq
    %v1572 = vshrl.u32 %v1571, 7
    %v1573 = vsub.s32 0, %v1572
    %v1574 = vrot.slane %v1538, %v1573
    %v1575 = vadd.f32 %v1569, %v1574
    %v1576 = vadd.f32 %v1570, %v1574
    %v1577 = vld [vmem:[%s10] sm:$0xf]
    %v1578 = vld [vmem:[%s10 + $0x4] sm:$0xf]
    %v1579 = vld [vmem:[%s10 + $0x8] sm:$0xf]
    %v1580 = vld [vmem:[%s10 + $0xc] sm:$0xf]
    %v1581 = vpack.c.bf16 %v1576, %v1575
    %v1582 = vld [vmem:[%s4 + $0x2] sm:$0x1]
    %v1583 = vlaneseq
    %v1584 = vshrl.u32 %v1583, 7
    %v1585 = vsub.s32 0, %v1584
    %v1586 = vrot.slane %v1582, %v1585
    %v1591 = vunpack.c.l.b16 %v1577
    %v1592 = vunpack.c.l.b16 %v1578
    %v1593 = vunpack.c.l.b16 %v1579
    %v1594 = vunpack.c.l.b16 %v1580
    %v1595 = vpack.c.b16 %v1592, %v1591
    %v1596 = vpack.c.b16 %v1594, %v1593
    %v1600 = vsel %vm218, %v1581, 0
    %1602 = vmatprep.subr.bf16.mxu0 0
    %1603 = vmatpush1.bf16.msra.mxu0 %v1595
    %1604 = vmatprep.subr.bf16.mxu0 0
    %1605 = vmatpush1.bf16.msra.mxu0 %v1596
    %1606 = vmatprep.subr.bf16.mxu0 0
    %1607 = vmatpush1.bf16.msra.mxu0 0
    %1608 = vmatprep.subr.bf16.mxu0 0
    %1609 = vmatpush1.bf16.msra.mxu0 0
    %1610 = vmatprep.subr.bf16.mxu0 0
    %1611 = vmatpush1.bf16.msra.mxu0 0
    %1612 = vmatprep.subr.bf16.mxu0 0
    %1613 = vmatpush1.bf16.msra.mxu0 0
    %1614 = vmatprep.subr.bf16.mxu0 0
    %1615 = vmatpush1.bf16.msra.mxu0 0
    %1616 = vmatprep.subr.bf16.mxu0 0
    %1617 = vmatpush1.bf16.msra.mxu0 0
    %1618 = vmatprep.subr.bf16.mxu0 0
    %1619 = vmatpush1.bf16.msra.mxu0 0
    %1620 = vmatprep.subr.bf16.mxu0 0
    %1621 = vmatpush1.bf16.msra.mxu0 0
    %1622 = vmatprep.subr.bf16.mxu0 0
    %1623 = vmatpush1.bf16.msra.mxu0 0
    %1624 = vmatprep.subr.bf16.mxu0 0
    %1625 = vmatpush1.bf16.msra.mxu0 0
    %1626 = vmatprep.subr.bf16.mxu0 0
    %1627 = vmatpush1.bf16.msra.mxu0 0
    %1628 = vmatprep.subr.bf16.mxu0 0
    %1629 = vmatpush1.bf16.msra.mxu0 0
    %1630 = vmatprep.subr.bf16.mxu0 0
    %1631 = vmatpush1.bf16.msra.mxu0 0
    %1632 = vmatprep.subr.bf16.mxu0 0
    %1633 = vmatpush1.bf16.msra.mxu0 0
    %1634 = vmatprep.mubr.bf16.mxu0 0
    %1635 = vmatmul.mubr.bf16.gmra.mrb[0].mxu0 %v1600
    %v1636 = vpop.f32.mrb[0].mxu0
    %v1637 = vadd.f32 %v1586, %v1636
    %v1638 = vpop.f32.mrb[0].mxu0
    %v1639 = vpop.f32.mrb[0].mxu0
    %v1640 = vadd.f32 %v1586, %v1639
    %v1641 = vpop.f32.mrb[0].mxu0
    %1642 = vdwg.mxu0
    %1643 = vmax.xlane.f32.xlu0 %v1637
    %v1644 = vpop.xlane.xlu0 %1643
    %1645 = vmax.xlane.f32.xlu0 %v1640
    %v1646 = vpop.xlane.xlu0 %1645
    %v1647 = vsub.f32 %v1637, %v1644
    %v1648 = vsub.f32 %v1640, %v1646
    %v1649 = vmul.f32 %v1647, 1.442695
    %v1650 = vpow.pop %v1649
    %v1651 = vmul.f32 %v1648, 1.442695
    %v1652 = vpow.pop %v1651
    %1653 = vadd.xlane.f32.xlu0 %v1650
    %v1654 = vpop.xlane.xlu0 %1653
    %1655 = vadd.xlane.f32.xlu0 %v1652
    %v1656 = vpop.xlane.xlu0 %1655
    %v1657 = vrcp.pop %v1654
    %v1658 = vmul.f32 %v1650, %v1657
    %v1659 = vrcp.pop %v1656
    %v1660 = vmul.f32 %v1652, %v1659
    %1661 = vst [vmem:[#allocation3] sm:$0xff] %v1658
    %1662 = vst [vmem:[#allocation3 + $0x8] sm:$0xff] %v1660
    // Predicated region
    $region46: #{tpu_custom_call.1} parent=1 // pred_check
      _
    $region47: #{tpu_custom_call.1} parent=1 // pred_check_branch
      %1664 = sbr.rel (0) target = $region49
    $region48: #{tpu_custom_call.1} parent=1 // pred_region
      %s1666 = ssub.s32 256, 256
      %1667 = vsyncadd [#allocation4], %s1666
      %s1668 = sshll.u32 [#allocation3], 4
      %s1669 = int_to_ptr.vmem [resolvable:$true] %s1668
      %1674 = dma.vmem_to_hbm [thread:$0]  %s1669, 256, %s11, [#allocation4], 128, 128, 8
    $region49: #{tpu_custom_call.1} parent=1 // pred_fallthru
      _
    // Predicated region
    $region50: #{tpu_custom_call.1} parent=1 // pred_check
      _
    $region51: #{tpu_custom_call.1} parent=1 // pred_check_branch
      %1676 = sbr.rel (0) target = $region53
    $region52: #{tpu_custom_call.1} parent=1 // pred_region
      %1677 = dma.done [#allocation4], 256
    $region53: #{tpu_custom_call.1} parent=1 // pred_fallthru
      _
    %1678 = vsyncpa [#allocation4], 1

</llo_original>
